<compile_context>
chip_gen: v7x
topology: tpu7x:2x2x1
jax: 0.10.0
libtpu: 0.0.40
codegen_flags: <defaults>
</compile_context>

<pallas_src>
import jax
import jax.numpy as jnp
from jax import lax
from jax.experimental import pallas as pl
from jax.experimental.pallas import tpu as pltpu

EPS = 1e-5  # torch.nn.LayerNorm default


def _erf(x):
    # Abramowitz & Stegun 7.1.26, max abs err ~1.5e-7 — matches nn.GELU
    # (approximate='none') at f32 precision and is known to lower cleanly.
    a1, a2, a3, a4, a5 = 0.254829592, -0.284496736, 1.421413741, -1.453152027, 1.061405429
    p = 0.3275911
    sgn = jnp.where(x >= 0.0, 1.0, -1.0)
    ax = jnp.abs(x)
    t = 1.0 / (1.0 + p * ax)
    poly = ((((a5 * t + a4) * t + a3) * t + a2) * t + a1) * t
    return sgn * (1.0 - poly * jnp.exp(-ax * ax))


def _gelu_exact(x):
    return 0.5 * x * (1.0 + _erf(x * 0.7071067811865476))


def _layernorm(x, w, b):
    mu = jnp.mean(x, axis=-1, keepdims=True)
    var = jnp.mean(jnp.square(x - mu), axis=-1, keepdims=True)
    return (x - mu) * lax.rsqrt(var + EPS) * w + b


def _scramble_segments(N, C):
    """Static copy plan for `reshape(av^T, (N, C))`: list of (d, pos, r, c, w)
    meaning y[r, c:c+w] = avT[d, pos:pos+w]. Verified to cover every element
    exactly once (trace-time check, zero runtime cost)."""
    segs = []
    covered = 0
    for d in range(C):
        pos = 0
        while pos < N:
            flat = d * N + pos
            r, c = flat // C, flat % C
            w = min(N - pos, C - c)
            segs.append((d, pos, r, c, w))
            covered += w
            pos += w
    assert covered == N * C, (covered, N * C)
    return segs


def _block_kernel(x_ref, g1_ref, b1_ref, wqkv_ref, wp_ref, bp_ref,
                  g2_ref, b2_ref, w1_ref, bb1_ref, w2_ref, bb2_ref,
                  o_ref, arow_ref,
                  qkv_sc, avT_sc, y_sc):
    """One batch element per grid step: LN1 -> fused qkv -> softmax attention ->
    in-kernel transpose/reshape scramble -> proj -> 2x residual -> LN2 -> MLP."""
    N, C = y_sc.shape

    x = x_ref[0]                                                    # (N, C)
    xn = _layernorm(x, g1_ref[...], b1_ref[...])

    # Fused qkv (no bias): one MXU pass producing 3C output lanes.
    qkv_sc[...] = jnp.dot(xn, wqkv_ref[...], preferred_element_type=jnp.float32)
    q = qkv_sc[:, 0 * C:1 * C]
    k = qkv_sc[:, 1 * C:2 * C]
    v = qkv_sc[:, 2 * C:3 * C]

    scale = C ** (-0.5)
    s = lax.dot_general(q, k, (((1,), (1,)), ((), ())),             # q @ k^T, no transpose op
                        preferred_element_type=jnp.float32) * scale  # (N, N)
    s = s - jnp.max(s, axis=-1, keepdims=True)                      # torch.softmax is max-shifted too
    e = jnp.exp(s)
    attn = e * pl.reciprocal(jnp.sum(e, axis=-1, keepdims=True), approx=False)

    arow_ref[0] = attn[0:1, :]                                      # cls-token attention row

    av = jnp.dot(attn, v, preferred_element_type=jnp.float32)       # (N, C)
    avT_sc[...] = jnp.transpose(av)                                 # (C, N), one XLU transpose

    # PyTorch's `(attn @ v).transpose(1, 2).reshape(B, N, C)`: regroup the
    # row-major flattening of av^T into rows of length C. Static, lane-contiguous
    # sub-row copies through VMEM scratch; every target element written once.
    for d, pos, r, c, w in _scramble_segments(N, C):
        y_sc[r:r + 1, c:c + w] = avT_sc[d:d + 1, pos:pos + w]

    y = y_sc[...]                                                   # (N, C), scrambled

    a = jnp.dot(y, wp_ref[...], preferred_element_type=jnp.float32) + bp_ref[...]
    x2 = 2.0 * a               # Block overwrites x: x = attn_out + drop_path(attn_out)

    xn2 = _layernorm(x2, g2_ref[...], b2_ref[...])
    h = jnp.dot(xn2, w1_ref[...], preferred_element_type=jnp.float32) + bb1_ref[...]
    h = _gelu_exact(h)
    m = jnp.dot(h, w2_ref[...], preferred_element_type=jnp.float32) + bb2_ref[...]

    o_ref[0] = x2 + m


def block_forward(x, params):
    B, N, C = x.shape
    H = params["w1"].shape[1]
    attn_size = int((N - 1) ** 0.5)
    f32 = jnp.float32

    # Fuse the three qkv projections into a single (C, 3C) weight (one MXU pass).
    wqkv = jnp.concatenate([params["wq"], params["wk"], params["wv"]], axis=1)

    def wspec(shape):
        # Constant index map -> block stays resident in VMEM across grid steps.
        return pl.BlockSpec(shape, lambda b: (0, 0))

    x_out, arow = pl.pallas_call(
        _block_kernel,
        grid=(B,),
        in_specs=[
            pl.BlockSpec((1, N, C), lambda b: (b, 0, 0)),
            wspec((1, C)), wspec((1, C)),                 # layernorm1 gamma / beta
            wspec((C, 3 * C)),                            # fused Wqkv
            wspec((C, C)), wspec((1, C)),                 # proj weight / bias
            wspec((1, C)), wspec((1, C)),                 # layernorm2 gamma / beta
            wspec((C, H)), wspec((1, H)),                 # fc1
            wspec((H, C)), wspec((1, C)),                 # fc2
        ],
        out_specs=[
            pl.BlockSpec((1, N, C), lambda b: (b, 0, 0)),
            pl.BlockSpec((1, 1, N), lambda b: (b, 0, 0)),
        ],
        out_shape=[
            jax.ShapeDtypeStruct((B, N, C), f32),
            jax.ShapeDtypeStruct((B, 1, N), f32),
        ],
        scratch_shapes=[
            pltpu.VMEM((N, 3 * C), f32),                  # fused qkv
            pltpu.VMEM((C, N), f32),                      # (attn @ v)^T
            pltpu.VMEM((N, C), f32),                      # scrambled attention output
        ],
        # "parallel" batch axis: with B >= 2 both v7x TensorCores get work.
        # For much larger B, process a (TB, N, C) tile per step instead.
        compiler_params=pltpu.CompilerParams(dimension_semantics=("parallel",)),
    )(x, params["ln1_w"], params["ln1_b"], wqkv,
      params["proj_w"], params["proj_b"], params["ln2_w"], params["ln2_b"],
      params["w1"], params["b1"], params["w2"], params["b2"])

    token_attn = arow[:, 0, 1:].reshape(B, 1, attn_size, attn_size)
    # TODO(synk): Dropout / DropPath are identity (all ratios = 0, eval mode) and
    # the debug print(attn[:,0,1:].shape) is omitted. At real ViT widths
    # (C ~ 768+), tile the MLP weights over H and raise vmem_limit_bytes
    # (v7x VMEM = 64 MiB).
    return x_out, token_attn


def _block_reference(x, params):
    """Pure-JAX reference of the PyTorch Block forward (eval mode)."""
    B, N, C = x.shape
    attn_size = int((N - 1) ** 0.5)

    def ln(z, w, b):
        mu = jnp.mean(z, axis=-1, keepdims=True)
        var = jnp.mean(jnp.square(z - mu), axis=-1, keepdims=True)
        return (z - mu) * lax.rsqrt(var + EPS) * w + b

    xn = ln(x, params["ln1_w"], params["ln1_b"])
    q = xn @ params["wq"]
    k = xn @ params["wk"]
    v = xn @ params["wv"]
    attn = jax.nn.softmax(jnp.einsum('bnc,bmc->bnm', q, k) * C ** (-0.5), axis=-1)
    av = jnp.einsum('bnm,bmc->bnc', attn, v)
    y = jnp.transpose(av, (0, 2, 1)).reshape(B, N, C)
    a = y @ params["proj_w"] + params["proj_b"]
    x2 = 2.0 * a
    xn2 = ln(x2, params["ln2_w"], params["ln2_b"])
    h = jax.nn.gelu(xn2 @ params["w1"] + params["b1"], approximate=False)
    m = h @ params["w2"] + params["b2"]
    token_attn = attn[:, 0, 1:].reshape(B, 1, attn_size, attn_size)
    return x2 + m, token_attn


if __name__ == "__main__":
    B, N, C = 2, 17, 32          # N = 1 cls token + 4*4 patch tokens -> attn_size = 4
    H = int(C * 4.0)             # mlp_ratio = 4.0
    f32 = jnp.float32

    key = jax.random.PRNGKey(0)
    ks = jax.random.split(key, 10)
    params = dict(
        ln1_w=jnp.ones((1, C), f32), ln1_b=jnp.zeros((1, C), f32),
        wq=0.05 * jax.random.normal(ks[0], (C, C), f32),
        wk=0.05 * jax.random.normal(ks[1], (C, C), f32),
        wv=0.05 * jax.random.normal(ks[2], (C, C), f32),
        proj_w=0.05 * jax.random.normal(ks[3], (C, C), f32),
        proj_b=0.02 * jax.random.normal(ks[7], (1, C), f32),
        ln2_w=jnp.ones((1, C), f32), ln2_b=jnp.zeros((1, C), f32),
        w1=0.05 * jax.random.normal(ks[4], (C, H), f32),
        b1=0.02 * jax.random.normal(ks[8], (1, H), f32),
        w2=0.05 * jax.random.normal(ks[5], (H, C), f32),
        b2=0.02 * jax.random.normal(ks[9], (1, C), f32),
    )
    x = jax.random.normal(ks[6], (B, N, C), f32)

    x_out, token_attn = block_forward(x, params)
    jax.block_until_ready((x_out, token_attn))
    assert x_out.shape == (B, N, C)
    assert token_attn.shape == (B, 1, 4, 4)

    # Structural correctness guard vs a pure-JAX reference (loose tolerance:
    # MXU f32 passes differ slightly from XLA's default-precision dots).
    x_ref, ta_ref = _block_reference(x, params)
    err_x = float(jnp.max(jnp.abs(x_out - x_ref)))
    err_a = float(jnp.max(jnp.abs(token_attn - ta_ref)))
    assert err_x < 5e-2 and err_a < 5e-2, (err_x, err_a)
    print("KERNEL_OK")
</pallas_src>

<mosaic_0001>
module attributes {stable_mosaic.version = 11 : i64} {
  func.func @_block_kernel(%arg0: i32, %arg1: memref<1x17x32xf32, #tpu.memory_space<vmem>>, %arg2: memref<1x32xf32, #tpu.memory_space<vmem>>, %arg3: memref<1x32xf32, #tpu.memory_space<vmem>>, %arg4: memref<32x96xf32, #tpu.memory_space<vmem>>, %arg5: memref<32x32xf32, #tpu.memory_space<vmem>>, %arg6: memref<1x32xf32, #tpu.memory_space<vmem>>, %arg7: memref<1x32xf32, #tpu.memory_space<vmem>>, %arg8: memref<1x32xf32, #tpu.memory_space<vmem>>, %arg9: memref<32x128xf32, #tpu.memory_space<vmem>>, %arg10: memref<1x128xf32, #tpu.memory_space<vmem>>, %arg11: memref<128x32xf32, #tpu.memory_space<vmem>>, %arg12: memref<1x32xf32, #tpu.memory_space<vmem>>, %arg13: memref<1x17x32xf32, #tpu.memory_space<vmem>>, %arg14: memref<1x1x17xf32, #tpu.memory_space<vmem>>, %arg15: memref<17x96xf32, #tpu.memory_space<vmem>>, %arg16: memref<32x17xf32, #tpu.memory_space<vmem>>, %arg17: memref<17x32xf32, #tpu.memory_space<vmem>>) attributes {dimension_semantics = [#tpu.dimension_semantics<parallel>], iteration_bounds = array<i64: 2>, scalar_prefetch = 0 : i64, scratch_operands = 3 : i64, tpu.core_type = #tpu.core_type<tc>, window_params = [{transform_indices = @transform_0, window_bounds = array<i64: 1, 17, 32>}, {pipeline_mode = #tpu.pipeline_mode<synchronous>, transform_indices = @transform_1, window_bounds = array<i64: 1, 32>}, {pipeline_mode = #tpu.pipeline_mode<synchronous>, transform_indices = @transform_2, window_bounds = array<i64: 1, 32>}, {pipeline_mode = #tpu.pipeline_mode<synchronous>, transform_indices = @transform_3, window_bounds = array<i64: 32, 96>}, {pipeline_mode = #tpu.pipeline_mode<synchronous>, transform_indices = @transform_4, window_bounds = array<i64: 32, 32>}, {pipeline_mode = #tpu.pipeline_mode<synchronous>, transform_indices = @transform_5, window_bounds = array<i64: 1, 32>}, {pipeline_mode = #tpu.pipeline_mode<synchronous>, transform_indices = @transform_6, window_bounds = array<i64: 1, 32>}, {pipeline_mode = #tpu.pipeline_mode<synchronous>, transform_indices = @transform_7, window_bounds = array<i64: 1, 32>}, {pipeline_mode = #tpu.pipeline_mode<synchronous>, transform_indices = @transform_8, window_bounds = array<i64: 32, 128>}, {pipeline_mode = #tpu.pipeline_mode<synchronous>, transform_indices = @transform_9, window_bounds = array<i64: 1, 128>}, {pipeline_mode = #tpu.pipeline_mode<synchronous>, transform_indices = @transform_10, window_bounds = array<i64: 128, 32>}, {pipeline_mode = #tpu.pipeline_mode<synchronous>, transform_indices = @transform_11, window_bounds = array<i64: 1, 32>}, {transform_indices = @transform_12, window_bounds = array<i64: 1, 17, 32>}, {transform_indices = @transform_13, window_bounds = array<i64: 1, 1, 17>}]} {
    %c0 = arith.constant 0 : index
    %c0_0 = arith.constant 0 : index
    %c0_1 = arith.constant 0 : index
    %0 = vector.load %arg1[%c0, %c0_0, %c0_1] : memref<1x17x32xf32, #tpu.memory_space<vmem>>, vector<1x17x32xf32>
    %1 = vector.shape_cast %0 : vector<1x17x32xf32> to vector<17x32xf32>
    %c0_2 = arith.constant 0 : index
    %c0_3 = arith.constant 0 : index
    %2 = vector.load %arg2[%c0_2, %c0_3] : memref<1x32xf32, #tpu.memory_space<vmem>>, vector<1x32xf32>
    %c0_4 = arith.constant 0 : index
    %c0_5 = arith.constant 0 : index
    %3 = vector.load %arg3[%c0_4, %c0_5] : memref<1x32xf32, #tpu.memory_space<vmem>>, vector<1x32xf32>
    %cst = arith.constant dense<0.000000e+00> : vector<17xf32>
    %4 = vector.multi_reduction <add>, %1, %cst [1] : vector<17x32xf32> to vector<17xf32>
    %5 = vector.shape_cast %4 : vector<17xf32> to vector<17x1xf32>
    %cst_6 = arith.constant 3.200000e+01 : f32
    %6 = vector.broadcast %cst_6 : f32 to vector<17x1xf32>
    %7 = arith.divf %5, %6 : vector<17x1xf32>
    %8 = vector.broadcast %7 : vector<17x1xf32> to vector<17x32xf32>
    %9 = arith.subf %1, %8 : vector<17x32xf32>
    %10 = arith.mulf %9, %9 : vector<17x32xf32>
    %cst_7 = arith.constant dense<0.000000e+00> : vector<17xf32>
    %11 = vector.multi_reduction <add>, %10, %cst_7 [1] : vector<17x32xf32> to vector<17xf32>
    %12 = vector.shape_cast %11 : vector<17xf32> to vector<17x1xf32>
    %cst_8 = arith.constant 3.200000e+01 : f32
    %13 = vector.broadcast %cst_8 : f32 to vector<17x1xf32>
    %14 = arith.divf %12, %13 : vector<17x1xf32>
    %15 = vector.broadcast %7 : vector<17x1xf32> to vector<17x32xf32>
    %16 = arith.subf %1, %15 : vector<17x32xf32>
    %cst_9 = arith.constant 9.99999974E-6 : f32
    %17 = vector.broadcast %cst_9 : f32 to vector<17x1xf32>
    %18 = arith.addf %14, %17 : vector<17x1xf32>
    %19 = math.rsqrt %18 : vector<17x1xf32>
    %20 = vector.broadcast %19 : vector<17x1xf32> to vector<17x32xf32>
    %21 = arith.mulf %16, %20 : vector<17x32xf32>
    %22 = vector.broadcast %2 : vector<1x32xf32> to vector<17x32xf32>
    %23 = arith.mulf %21, %22 : vector<17x32xf32>
    %24 = vector.broadcast %3 : vector<1x32xf32> to vector<17x32xf32>
    %25 = arith.addf %23, %24 : vector<17x32xf32>
    %c0_10 = arith.constant 0 : index
    %c0_11 = arith.constant 0 : index
    %26 = vector.load %arg4[%c0_10, %c0_11] : memref<32x96xf32, #tpu.memory_space<vmem>>, vector<32x96xf32>
    %cst_12 = arith.constant dense<0.000000e+00> : vector<17x96xf32>
    %27 = tpu.matmul %25, %26, %cst_12 {dimension_numbers = #tpu.dot_dimension_numbers<[1], [0], [0], [1], [0, 0, 1, 1], [], []>} : vector<17x32xf32>, vector<32x96xf32>, vector<17x96xf32> -> vector<17x96xf32>
    %c0_13 = arith.constant 0 : index
    %c0_14 = arith.constant 0 : index
    %28 = vector.load %arg15[%c0_13, %c0_14] : memref<17x96xf32, #tpu.memory_space<vmem>>, vector<17x96xf32>
    tpu.vector_store %arg15[%c0_13, %c0_14], %27 {strides = array<i32>} : memref<17x96xf32, #tpu.memory_space<vmem>>, vector<17x96xf32>,
    %c0_15 = arith.constant 0 : index
    %c0_16 = arith.constant 0 : index
    %29 = vector.load %arg15[%c0_15, %c0_16] : memref<17x96xf32, #tpu.memory_space<vmem>>, vector<17x32xf32>
    %c0_17 = arith.constant 0 : index
    %c32 = arith.constant 32 : index
    %30 = vector.load %arg15[%c0_17, %c32] : memref<17x96xf32, #tpu.memory_space<vmem>>, vector<17x32xf32>
    %c0_18 = arith.constant 0 : index
    %c64 = arith.constant 64 : index
    %31 = vector.load %arg15[%c0_18, %c64] : memref<17x96xf32, #tpu.memory_space<vmem>>, vector<17x32xf32>
    %cst_19 = arith.constant dense<0.000000e+00> : vector<17x17xf32>
    %32 = tpu.matmul %29, %30, %cst_19 {dimension_numbers = #tpu.dot_dimension_numbers<[1], [1], [0], [0], [0, 0, 1, 0], [], []>} : vector<17x32xf32>, vector<17x32xf32>, vector<17x17xf32> -> vector<17x17xf32>
    %cst_20 = arith.constant 0.176776692 : f32
    %33 = vector.broadcast %cst_20 : f32 to vector<17x17xf32>
    %34 = arith.mulf %32, %33 : vector<17x17xf32>
    %cst_21 = arith.constant dense<0xFF800000> : vector<17xf32>
    %35 = vector.multi_reduction <maximumf>, %34, %cst_21 [1] : vector<17x17xf32> to vector<17xf32>
    %36 = vector.shape_cast %35 : vector<17xf32> to vector<17x1xf32>
    %37 = vector.broadcast %36 : vector<17x1xf32> to vector<17x17xf32>
    %38 = arith.subf %34, %37 : vector<17x17xf32>
    %39 = math.exp %38 : vector<17x17xf32>
    %cst_22 = arith.constant dense<0.000000e+00> : vector<17xf32>
    %40 = vector.multi_reduction <add>, %39, %cst_22 [1] : vector<17x17xf32> to vector<17xf32>
    %41 = vector.shape_cast %40 : vector<17xf32> to vector<17x1xf32>
    %42 = tpu.reciprocal %41 : vector<17x1xf32> -> vector<17x1xf32>
    %43 = vector.broadcast %42 : vector<17x1xf32> to vector<17x17xf32>
    %44 = arith.mulf %39, %43 : vector<17x17xf32>
    %45 = vector.extract_strided_slice %44 {offsets = [0, 0], sizes = [1, 17], strides = [1, 1]} : vector<17x17xf32> to vector<1x17xf32>
    %c0_23 = arith.constant 0 : index
    %c0_24 = arith.constant 0 : index
    %c0_25 = arith.constant 0 : index
    %46 = vector.load %arg14[%c0_23, %c0_24, %c0_25] : memref<1x1x17xf32, #tpu.memory_space<vmem>>, vector<1x1x17xf32>
    %47 = vector.shape_cast %46 : vector<1x1x17xf32> to vector<1x17xf32>
    %48 = vector.shape_cast %45 : vector<1x17xf32> to vector<1x1x17xf32>
    tpu.vector_store %arg14[%c0_23, %c0_24, %c0_25], %48 {strides = array<i32>} : memref<1x1x17xf32, #tpu.memory_space<vmem>>, vector<1x1x17xf32>,
    %cst_26 = arith.constant dense<0.000000e+00> : vector<17x32xf32>
    %49 = tpu.matmul %44, %31, %cst_26 {dimension_numbers = #tpu.dot_dimension_numbers<[1], [0], [0], [1], [0, 0, 1, 1], [], []>} : vector<17x17xf32>, vector<17x32xf32>, vector<17x32xf32> -> vector<17x32xf32>
    %50 = tpu.transpose %49, [1, 0] : vector<17x32xf32> -> vector<32x17xf32>
    %c0_27 = arith.constant 0 : index
    %c0_28 = arith.constant 0 : index
    %51 = vector.load %arg16[%c0_27, %c0_28] : memref<32x17xf32, #tpu.memory_space<vmem>>, vector<32x17xf32>
    tpu.vector_store %arg16[%c0_27, %c0_28], %50 {strides = array<i32>} : memref<32x17xf32, #tpu.memory_space<vmem>>, vector<32x17xf32>,
    %c0_29 = arith.constant 0 : index
    %c0_30 = arith.constant 0 : index
    %52 = vector.load %arg16[%c0_29, %c0_30] : memref<32x17xf32, #tpu.memory_space<vmem>>, vector<1x17xf32>
    %c0_31 = arith.constant 0 : index
    %c0_32 = arith.constant 0 : index
    %53 = vector.load %arg17[%c0_31, %c0_32] : memref<17x32xf32, #tpu.memory_space<vmem>>, vector<1x17xf32>
    tpu.vector_store %arg17[%c0_31, %c0_32], %52 {strides = array<i32>} : memref<17x32xf32, #tpu.memory_space<vmem>>, vector<1x17xf32>,
    %c1 = arith.constant 1 : index
    %c0_33 = arith.constant 0 : index
    %54 = vector.load %arg16[%c1, %c0_33] : memref<32x17xf32, #tpu.memory_space<vmem>>, vector<1x15xf32>
    %c0_34 = arith.constant 0 : index
    %c17 = arith.constant 17 : index
    %55 = vector.load %arg17[%c0_34, %c17] : memref<17x32xf32, #tpu.memory_space<vmem>>, vector<1x15xf32>
    tpu.vector_store %arg17[%c0_34, %c17], %54 {strides = array<i32>} : memref<17x32xf32, #tpu.memory_space<vmem>>, vector<1x15xf32>,
    %c1_35 = arith.constant 1 : index
    %c15 = arith.constant 15 : index
    %56 = vector.load %arg16[%c1_35, %c15] : memref<32x17xf32, #tpu.memory_space<vmem>>, vector<1x2xf32>
    %c1_36 = arith.constant 1 : index
    %c0_37 = arith.constant 0 : index
    %57 = vector.load %arg17[%c1_36, %c0_37] : memref<17x32xf32, #tpu.memory_space<vmem>>, vector<1x2xf32>
    tpu.vector_store %arg17[%c1_36, %c0_37], %56 {strides = array<i32>} : memref<17x32xf32, #tpu.memory_space<vmem>>, vector<1x2xf32>,
    %c2 = arith.constant 2 : index
    %c0_38 = arith.constant 0 : index
    %58 = vector.load %arg16[%c2, %c0_38] : memref<32x17xf32, #tpu.memory_space<vmem>>, vector<1x17xf32>
    %c1_39 = arith.constant 1 : index
    %c2_40 = arith.constant 2 : index
    %59 = vector.load %arg17[%c1_39, %c2_40] : memref<17x32xf32, #tpu.memory_space<vmem>>, vector<1x17xf32>
    tpu.vector_store %arg17[%c1_39, %c2_40], %58 {strides = array<i32>} : memref<17x32xf32, #tpu.memory_space<vmem>>, vector<1x17xf32>,
    %c3 = arith.constant 3 : index
    %c0_41 = arith.constant 0 : index
    %60 = vector.load %arg16[%c3, %c0_41] : memref<32x17xf32, #tpu.memory_space<vmem>>, vector<1x13xf32>
    %c1_42 = arith.constant 1 : index
    %c19 = arith.constant 19 : index
    %61 = vector.load %arg17[%c1_42, %c19] : memref<17x32xf32, #tpu.memory_space<vmem>>, vector<1x13xf32>
    tpu.vector_store %arg17[%c1_42, %c19], %60 {strides = array<i32>} : memref<17x32xf32, #tpu.memory_space<vmem>>, vector<1x13xf32>,
    %c3_43 = arith.constant 3 : index
    %c13 = arith.constant 13 : index
    %62 = vector.load %arg16[%c3_43, %c13] : memref<32x17xf32, #tpu.memory_space<vmem>>, vector<1x4xf32>
    %c2_44 = arith.constant 2 : index
    %c0_45 = arith.constant 0 : index
    %63 = vector.load %arg17[%c2_44, %c0_45] : memref<17x32xf32, #tpu.memory_space<vmem>>, vector<1x4xf32>
    tpu.vector_store %arg17[%c2_44, %c0_45], %62 {strides = array<i32>} : memref<17x32xf32, #tpu.memory_space<vmem>>, vector<1x4xf32>,
    %c4 = arith.constant 4 : index
    %c0_46 = arith.constant 0 : index
    %64 = vector.load %arg16[%c4, %c0_46] : memref<32x17xf32, #tpu.memory_space<vmem>>, vector<1x17xf32>
    %c2_47 = arith.constant 2 : index
    %c4_48 = arith.constant 4 : index
    %65 = vector.load %arg17[%c2_47, %c4_48] : memref<17x32xf32, #tpu.memory_space<vmem>>, vector<1x17xf32>
    tpu.vector_store %arg17[%c2_47, %c4_48], %64 {strides = array<i32>} : memref<17x32xf32, #tpu.memory_space<vmem>>, vector<1x17xf32>,
    %c5 = arith.constant 5 : index
    %c0_49 = arith.constant 0 : index
    %66 = vector.load %arg16[%c5, %c0_49] : memref<32x17xf32, #tpu.memory_space<vmem>>, vector<1x11xf32>
    %c2_50 = arith.constant 2 : index
    %c21 = arith.constant 21 : index
    %67 = vector.load %arg17[%c2_50, %c21] : memref<17x32xf32, #tpu.memory_space<vmem>>, vector<1x11xf32>
    tpu.vector_store %arg17[%c2_50, %c21], %66 {strides = array<i32>} : memref<17x32xf32, #tpu.memory_space<vmem>>, vector<1x11xf32>,
    %c5_51 = arith.constant 5 : index
    %c11 = arith.constant 11 : index
    %68 = vector.load %arg16[%c5_51, %c11] : memref<32x17xf32, #tpu.memory_space<vmem>>, vector<1x6xf32>
    %c3_52 = arith.constant 3 : index
    %c0_53 = arith.constant 0 : index
    %69 = vector.load %arg17[%c3_52, %c0_53] : memref<17x32xf32, #tpu.memory_space<vmem>>, vector<1x6xf32>
    tpu.vector_store %arg17[%c3_52, %c0_53], %68 {strides = array<i32>} : memref<17x32xf32, #tpu.memory_space<vmem>>, vector<1x6xf32>,
    %c6 = arith.constant 6 : index
    %c0_54 = arith.constant 0 : index
    %70 = vector.load %arg16[%c6, %c0_54] : memref<32x17xf32, #tpu.memory_space<vmem>>, vector<1x17xf32>
    %c3_55 = arith.constant 3 : index
    %c6_56 = arith.constant 6 : index
    %71 = vector.load %arg17[%c3_55, %c6_56] : memref<17x32xf32, #tpu.memory_space<vmem>>, vector<1x17xf32>
    tpu.vector_store %arg17[%c3_55, %c6_56], %70 {strides = array<i32>} : memref<17x32xf32, #tpu.memory_space<vmem>>, vector<1x17xf32>,
    %c7 = arith.constant 7 : index
    %c0_57 = arith.constant 0 : index
    %72 = vector.load %arg16[%c7, %c0_57] : memref<32x17xf32, #tpu.memory_space<vmem>>, vector<1x9xf32>
    %c3_58 = arith.constant 3 : index
    %c23 = arith.constant 23 : index
    %73 = vector.load %arg17[%c3_58, %c23] : memref<17x32xf32, #tpu.memory_space<vmem>>, vector<1x9xf32>
    tpu.vector_store %arg17[%c3_58, %c23], %72 {strides = array<i32>} : memref<17x32xf32, #tpu.memory_space<vmem>>, vector<1x9xf32>,
    %c7_59 = arith.constant 7 : index
    %c9 = arith.constant 9 : index
    %74 = vector.load %arg16[%c7_59, %c9] : memref<32x17xf32, #tpu.memory_space<vmem>>, vector<1x8xf32>
    %c4_60 = arith.constant 4 : index
    %c0_61 = arith.constant 0 : index
    %75 = vector.load %arg17[%c4_60, %c0_61] : memref<17x32xf32, #tpu.memory_space<vmem>>, vector<1x8xf32>
    tpu.vector_store %arg17[%c4_60, %c0_61], %74 {strides = array<i32>} : memref<17x32xf32, #tpu.memory_space<vmem>>, vector<1x8xf32>,
    %c8 = arith.constant 8 : index
    %c0_62 = arith.constant 0 : index
    %76 = vector.load %arg16[%c8, %c0_62] : memref<32x17xf32, #tpu.memory_space<vmem>>, vector<1x17xf32>
    %c4_63 = arith.constant 4 : index
    %c8_64 = arith.constant 8 : index
    %77 = vector.load %arg17[%c4_63, %c8_64] : memref<17x32xf32, #tpu.memory_space<vmem>>, vector<1x17xf32>
    tpu.vector_store %arg17[%c4_63, %c8_64], %76 {strides = array<i32>} : memref<17x32xf32, #tpu.memory_space<vmem>>, vector<1x17xf32>,
    %c9_65 = arith.constant 9 : index
    %c0_66 = arith.constant 0 : index
    %78 = vector.load %arg16[%c9_65, %c0_66] : memref<32x17xf32, #tpu.memory_space<vmem>>, vector<1x7xf32>
    %c4_67 = arith.constant 4 : index
    %c25 = arith.constant 25 : index
    %79 = vector.load %arg17[%c4_67, %c25] : memref<17x32xf32, #tpu.memory_space<vmem>>, vector<1x7xf32>
    tpu.vector_store %arg17[%c4_67, %c25], %78 {strides = array<i32>} : memref<17x32xf32, #tpu.memory_space<vmem>>, vector<1x7xf32>,
    %c9_68 = arith.constant 9 : index
    %c7_69 = arith.constant 7 : index
    %80 = vector.load %arg16[%c9_68, %c7_69] : memref<32x17xf32, #tpu.memory_space<vmem>>, vector<1x10xf32>
    %c5_70 = arith.constant 5 : index
    %c0_71 = arith.constant 0 : index
    %81 = vector.load %arg17[%c5_70, %c0_71] : memref<17x32xf32, #tpu.memory_space<vmem>>, vector<1x10xf32>
    tpu.vector_store %arg17[%c5_70, %c0_71], %80 {strides = array<i32>} : memref<17x32xf32, #tpu.memory_space<vmem>>, vector<1x10xf32>,
    %c10 = arith.constant 10 : index
    %c0_72 = arith.constant 0 : index
    %82 = vector.load %arg16[%c10, %c0_72] : memref<32x17xf32, #tpu.memory_space<vmem>>, vector<1x17xf32>
    %c5_73 = arith.constant 5 : index
    %c10_74 = arith.constant 10 : index
    %83 = vector.load %arg17[%c5_73, %c10_74] : memref<17x32xf32, #tpu.memory_space<vmem>>, vector<1x17xf32>
    tpu.vector_store %arg17[%c5_73, %c10_74], %82 {strides = array<i32>} : memref<17x32xf32, #tpu.memory_space<vmem>>, vector<1x17xf32>,
    %c11_75 = arith.constant 11 : index
    %c0_76 = arith.constant 0 : index
    %84 = vector.load %arg16[%c11_75, %c0_76] : memref<32x17xf32, #tpu.memory_space<vmem>>, vector<1x5xf32>
    %c5_77 = arith.constant 5 : index
    %c27 = arith.constant 27 : index
    %85 = vector.load %arg17[%c5_77, %c27] : memref<17x32xf32, #tpu.memory_space<vmem>>, vector<1x5xf32>
    tpu.vector_store %arg17[%c5_77, %c27], %84 {strides = array<i32>} : memref<17x32xf32, #tpu.memory_space<vmem>>, vector<1x5xf32>,
    %c11_78 = arith.constant 11 : index
    %c5_79 = arith.constant 5 : index
    %86 = vector.load %arg16[%c11_78, %c5_79] : memref<32x17xf32, #tpu.memory_space<vmem>>, vector<1x12xf32>
    %c6_80 = arith.constant 6 : index
    %c0_81 = arith.constant 0 : index
    %87 = vector.load %arg17[%c6_80, %c0_81] : memref<17x32xf32, #tpu.memory_space<vmem>>, vector<1x12xf32>
    tpu.vector_store %arg17[%c6_80, %c0_81], %86 {strides = array<i32>} : memref<17x32xf32, #tpu.memory_space<vmem>>, vector<1x12xf32>,
    %c12 = arith.constant 12 : index
    %c0_82 = arith.constant 0 : index
    %88 = vector.load %arg16[%c12, %c0_82] : memref<32x17xf32, #tpu.memory_space<vmem>>, vector<1x17xf32>
    %c6_83 = arith.constant 6 : index
    %c12_84 = arith.constant 12 : index
    %89 = vector.load %arg17[%c6_83, %c12_84] : memref<17x32xf32, #tpu.memory_space<vmem>>, vector<1x17xf32>
    tpu.vector_store %arg17[%c6_83, %c12_84], %88 {strides = array<i32>} : memref<17x32xf32, #tpu.memory_space<vmem>>, vector<1x17xf32>,
    %c13_85 = arith.constant 13 : index
    %c0_86 = arith.constant 0 : index
    %90 = vector.load %arg16[%c13_85, %c0_86] : memref<32x17xf32, #tpu.memory_space<vmem>>, vector<1x3xf32>
    %c6_87 = arith.constant 6 : index
    %c29 = arith.constant 29 : index
    %91 = vector.load %arg17[%c6_87, %c29] : memref<17x32xf32, #tpu.memory_space<vmem>>, vector<1x3xf32>
    tpu.vector_store %arg17[%c6_87, %c29], %90 {strides = array<i32>} : memref<17x32xf32, #tpu.memory_space<vmem>>, vector<1x3xf32>,
    %c13_88 = arith.constant 13 : index
    %c3_89 = arith.constant 3 : index
    %92 = vector.load %arg16[%c13_88, %c3_89] : memref<32x17xf32, #tpu.memory_space<vmem>>, vector<1x14xf32>
    %c7_90 = arith.constant 7 : index
    %c0_91 = arith.constant 0 : index
    %93 = vector.load %arg17[%c7_90, %c0_91] : memref<17x32xf32, #tpu.memory_space<vmem>>, vector<1x14xf32>
    tpu.vector_store %arg17[%c7_90, %c0_91], %92 {strides = array<i32>} : memref<17x32xf32, #tpu.memory_space<vmem>>, vector<1x14xf32>,
    %c14 = arith.constant 14 : index
    %c0_92 = arith.constant 0 : index
    %94 = vector.load %arg16[%c14, %c0_92] : memref<32x17xf32, #tpu.memory_space<vmem>>, vector<1x17xf32>
    %c7_93 = arith.constant 7 : index
    %c14_94 = arith.constant 14 : index
    %95 = vector.load %arg17[%c7_93, %c14_94] : memref<17x32xf32, #tpu.memory_space<vmem>>, vector<1x17xf32>
    tpu.vector_store %arg17[%c7_93, %c14_94], %94 {strides = array<i32>} : memref<17x32xf32, #tpu.memory_space<vmem>>, vector<1x17xf32>,
    %c15_95 = arith.constant 15 : index
    %c0_96 = arith.constant 0 : index
    %96 = vector.load %arg16[%c15_95, %c0_96] : memref<32x17xf32, #tpu.memory_space<vmem>>, vector<1x1xf32>
    %c7_97 = arith.constant 7 : index
    %c31 = arith.constant 31 : index
    %97 = vector.load %arg17[%c7_97, %c31] : memref<17x32xf32, #tpu.memory_space<vmem>>, vector<1x1xf32>
    tpu.vector_store %arg17[%c7_97, %c31], %96 {strides = array<i32>} : memref<17x32xf32, #tpu.memory_space<vmem>>, vector<1x1xf32>,
    %c15_98 = arith.constant 15 : index
    %c1_99 = arith.constant 1 : index
    %98 = vector.load %arg16[%c15_98, %c1_99] : memref<32x17xf32, #tpu.memory_space<vmem>>, vector<1x16xf32>
    %c8_100 = arith.constant 8 : index
    %c0_101 = arith.constant 0 : index
    %99 = vector.load %arg17[%c8_100, %c0_101] : memref<17x32xf32, #tpu.memory_space<vmem>>, vector<1x16xf32>
    tpu.vector_store %arg17[%c8_100, %c0_101], %98 {strides = array<i32>} : memref<17x32xf32, #tpu.memory_space<vmem>>, vector<1x16xf32>,
    %c16 = arith.constant 16 : index
    %c0_102 = arith.constant 0 : index
    %100 = vector.load %arg16[%c16, %c0_102] : memref<32x17xf32, #tpu.memory_space<vmem>>, vector<1x16xf32>
    %c8_103 = arith.constant 8 : index
    %c16_104 = arith.constant 16 : index
    %101 = vector.load %arg17[%c8_103, %c16_104] : memref<17x32xf32, #tpu.memory_space<vmem>>, vector<1x16xf32>
    tpu.vector_store %arg17[%c8_103, %c16_104], %100 {strides = array<i32>} : memref<17x32xf32, #tpu.memory_space<vmem>>, vector<1x16xf32>,
    %c16_105 = arith.constant 16 : index
    %c16_106 = arith.constant 16 : index
    %102 = vector.load %arg16[%c16_105, %c16_106] : memref<32x17xf32, #tpu.memory_space<vmem>>, vector<1x1xf32>
    %c9_107 = arith.constant 9 : index
    %c0_108 = arith.constant 0 : index
    %103 = vector.load %arg17[%c9_107, %c0_108] : memref<17x32xf32, #tpu.memory_space<vmem>>, vector<1x1xf32>
    tpu.vector_store %arg17[%c9_107, %c0_108], %102 {strides = array<i32>} : memref<17x32xf32, #tpu.memory_space<vmem>>, vector<1x1xf32>,
    %c17_109 = arith.constant 17 : index
    %c0_110 = arith.constant 0 : index
    %104 = vector.load %arg16[%c17_109, %c0_110] : memref<32x17xf32, #tpu.memory_space<vmem>>, vector<1x17xf32>
    %c9_111 = arith.constant 9 : index
    %c1_112 = arith.constant 1 : index
    %105 = vector.load %arg17[%c9_111, %c1_112] : memref<17x32xf32, #tpu.memory_space<vmem>>, vector<1x17xf32>
    tpu.vector_store %arg17[%c9_111, %c1_112], %104 {strides = array<i32>} : memref<17x32xf32, #tpu.memory_space<vmem>>, vector<1x17xf32>,
    %c18 = arith.constant 18 : index
    %c0_113 = arith.constant 0 : index
    %106 = vector.load %arg16[%c18, %c0_113] : memref<32x17xf32, #tpu.memory_space<vmem>>, vector<1x14xf32>
    %c9_114 = arith.constant 9 : index
    %c18_115 = arith.constant 18 : index
    %107 = vector.load %arg17[%c9_114, %c18_115] : memref<17x32xf32, #tpu.memory_space<vmem>>, vector<1x14xf32>
    tpu.vector_store %arg17[%c9_114, %c18_115], %106 {strides = array<i32>} : memref<17x32xf32, #tpu.memory_space<vmem>>, vector<1x14xf32>,
    %c18_116 = arith.constant 18 : index
    %c14_117 = arith.constant 14 : index
    %108 = vector.load %arg16[%c18_116, %c14_117] : memref<32x17xf32, #tpu.memory_space<vmem>>, vector<1x3xf32>
    %c10_118 = arith.constant 10 : index
    %c0_119 = arith.constant 0 : index
    %109 = vector.load %arg17[%c10_118, %c0_119] : memref<17x32xf32, #tpu.memory_space<vmem>>, vector<1x3xf32>
    tpu.vector_store %arg17[%c10_118, %c0_119], %108 {strides = array<i32>} : memref<17x32xf32, #tpu.memory_space<vmem>>, vector<1x3xf32>,
    %c19_120 = arith.constant 19 : index
    %c0_121 = arith.constant 0 : index
    %110 = vector.load %arg16[%c19_120, %c0_121] : memref<32x17xf32, #tpu.memory_space<vmem>>, vector<1x17xf32>
    %c10_122 = arith.constant 10 : index
    %c3_123 = arith.constant 3 : index
    %111 = vector.load %arg17[%c10_122, %c3_123] : memref<17x32xf32, #tpu.memory_space<vmem>>, vector<1x17xf32>
    tpu.vector_store %arg17[%c10_122, %c3_123], %110 {strides = array<i32>} : memref<17x32xf32, #tpu.memory_space<vmem>>, vector<1x17xf32>,
    %c20 = arith.constant 20 : index
    %c0_124 = arith.constant 0 : index
    %112 = vector.load %arg16[%c20, %c0_124] : memref<32x17xf32, #tpu.memory_space<vmem>>, vector<1x12xf32>
    %c10_125 = arith.constant 10 : index
    %c20_126 = arith.constant 20 : index
    %113 = vector.load %arg17[%c10_125, %c20_126] : memref<17x32xf32, #tpu.memory_space<vmem>>, vector<1x12xf32>
    tpu.vector_store %arg17[%c10_125, %c20_126], %112 {strides = array<i32>} : memref<17x32xf32, #tpu.memory_space<vmem>>, vector<1x12xf32>,
    %c20_127 = arith.constant 20 : index
    %c12_128 = arith.constant 12 : index
    %114 = vector.load %arg16[%c20_127, %c12_128] : memref<32x17xf32, #tpu.memory_space<vmem>>, vector<1x5xf32>
    %c11_129 = arith.constant 11 : index
    %c0_130 = arith.constant 0 : index
    %115 = vector.load %arg17[%c11_129, %c0_130] : memref<17x32xf32, #tpu.memory_space<vmem>>, vector<1x5xf32>
    tpu.vector_store %arg17[%c11_129, %c0_130], %114 {strides = array<i32>} : memref<17x32xf32, #tpu.memory_space<vmem>>, vector<1x5xf32>,
    %c21_131 = arith.constant 21 : index
    %c0_132 = arith.constant 0 : index
    %116 = vector.load %arg16[%c21_131, %c0_132] : memref<32x17xf32, #tpu.memory_space<vmem>>, vector<1x17xf32>
    %c11_133 = arith.constant 11 : index
    %c5_134 = arith.constant 5 : index
    %117 = vector.load %arg17[%c11_133, %c5_134] : memref<17x32xf32, #tpu.memory_space<vmem>>, vector<1x17xf32>
    tpu.vector_store %arg17[%c11_133, %c5_134], %116 {strides = array<i32>} : memref<17x32xf32, #tpu.memory_space<vmem>>, vector<1x17xf32>,
    %c22 = arith.constant 22 : index
    %c0_135 = arith.constant 0 : index
    %118 = vector.load %arg16[%c22, %c0_135] : memref<32x17xf32, #tpu.memory_space<vmem>>, vector<1x10xf32>
    %c11_136 = arith.constant 11 : index
    %c22_137 = arith.constant 22 : index
    %119 = vector.load %arg17[%c11_136, %c22_137] : memref<17x32xf32, #tpu.memory_space<vmem>>, vector<1x10xf32>
    tpu.vector_store %arg17[%c11_136, %c22_137], %118 {strides = array<i32>} : memref<17x32xf32, #tpu.memory_space<vmem>>, vector<1x10xf32>,
    %c22_138 = arith.constant 22 : index
    %c10_139 = arith.constant 10 : index
    %120 = vector.load %arg16[%c22_138, %c10_139] : memref<32x17xf32, #tpu.memory_space<vmem>>, vector<1x7xf32>
    %c12_140 = arith.constant 12 : index
    %c0_141 = arith.constant 0 : index
    %121 = vector.load %arg17[%c12_140, %c0_141] : memref<17x32xf32, #tpu.memory_space<vmem>>, vector<1x7xf32>
    tpu.vector_store %arg17[%c12_140, %c0_141], %120 {strides = array<i32>} : memref<17x32xf32, #tpu.memory_space<vmem>>, vector<1x7xf32>,
    %c23_142 = arith.constant 23 : index
    %c0_143 = arith.constant 0 : index
    %122 = vector.load %arg16[%c23_142, %c0_143] : memref<32x17xf32, #tpu.memory_space<vmem>>, vector<1x17xf32>
    %c12_144 = arith.constant 12 : index
    %c7_145 = arith.constant 7 : index
    %123 = vector.load %arg17[%c12_144, %c7_145] : memref<17x32xf32, #tpu.memory_space<vmem>>, vector<1x17xf32>
    tpu.vector_store %arg17[%c12_144, %c7_145], %122 {strides = array<i32>} : memref<17x32xf32, #tpu.memory_space<vmem>>, vector<1x17xf32>,
    %c24 = arith.constant 24 : index
    %c0_146 = arith.constant 0 : index
    %124 = vector.load %arg16[%c24, %c0_146] : memref<32x17xf32, #tpu.memory_space<vmem>>, vector<1x8xf32>
    %c12_147 = arith.constant 12 : index
    %c24_148 = arith.constant 24 : index
    %125 = vector.load %arg17[%c12_147, %c24_148] : memref<17x32xf32, #tpu.memory_space<vmem>>, vector<1x8xf32>
    tpu.vector_store %arg17[%c12_147, %c24_148], %124 {strides = array<i32>} : memref<17x32xf32, #tpu.memory_space<vmem>>, vector<1x8xf32>,
    %c24_149 = arith.constant 24 : index
    %c8_150 = arith.constant 8 : index
    %126 = vector.load %arg16[%c24_149, %c8_150] : memref<32x17xf32, #tpu.memory_space<vmem>>, vector<1x9xf32>
    %c13_151 = arith.constant 13 : index
    %c0_152 = arith.constant 0 : index
    %127 = vector.load %arg17[%c13_151, %c0_152] : memref<17x32xf32, #tpu.memory_space<vmem>>, vector<1x9xf32>
    tpu.vector_store %arg17[%c13_151, %c0_152], %126 {strides = array<i32>} : memref<17x32xf32, #tpu.memory_space<vmem>>, vector<1x9xf32>,
    %c25_153 = arith.constant 25 : index
    %c0_154 = arith.constant 0 : index
    %128 = vector.load %arg16[%c25_153, %c0_154] : memref<32x17xf32, #tpu.memory_space<vmem>>, vector<1x17xf32>
    %c13_155 = arith.constant 13 : index
    %c9_156 = arith.constant 9 : index
    %129 = vector.load %arg17[%c13_155, %c9_156] : memref<17x32xf32, #tpu.memory_space<vmem>>, vector<1x17xf32>
    tpu.vector_store %arg17[%c13_155, %c9_156], %128 {strides = array<i32>} : memref<17x32xf32, #tpu.memory_space<vmem>>, vector<1x17xf32>,
    %c26 = arith.constant 26 : index
    %c0_157 = arith.constant 0 : index
    %130 = vector.load %arg16[%c26, %c0_157] : memref<32x17xf32, #tpu.memory_space<vmem>>, vector<1x6xf32>
    %c13_158 = arith.constant 13 : index
    %c26_159 = arith.constant 26 : index
    %131 = vector.load %arg17[%c13_158, %c26_159] : memref<17x32xf32, #tpu.memory_space<vmem>>, vector<1x6xf32>
    tpu.vector_store %arg17[%c13_158, %c26_159], %130 {strides = array<i32>} : memref<17x32xf32, #tpu.memory_space<vmem>>, vector<1x6xf32>,
    %c26_160 = arith.constant 26 : index
    %c6_161 = arith.constant 6 : index
    %132 = vector.load %arg16[%c26_160, %c6_161] : memref<32x17xf32, #tpu.memory_space<vmem>>, vector<1x11xf32>
    %c14_162 = arith.constant 14 : index
    %c0_163 = arith.constant 0 : index
    %133 = vector.load %arg17[%c14_162, %c0_163] : memref<17x32xf32, #tpu.memory_space<vmem>>, vector<1x11xf32>
    tpu.vector_store %arg17[%c14_162, %c0_163], %132 {strides = array<i32>} : memref<17x32xf32, #tpu.memory_space<vmem>>, vector<1x11xf32>,
    %c27_164 = arith.constant 27 : index
    %c0_165 = arith.constant 0 : index
    %134 = vector.load %arg16[%c27_164, %c0_165] : memref<32x17xf32, #tpu.memory_space<vmem>>, vector<1x17xf32>
    %c14_166 = arith.constant 14 : index
    %c11_167 = arith.constant 11 : index
    %135 = vector.load %arg17[%c14_166, %c11_167] : memref<17x32xf32, #tpu.memory_space<vmem>>, vector<1x17xf32>
    tpu.vector_store %arg17[%c14_166, %c11_167], %134 {strides = array<i32>} : memref<17x32xf32, #tpu.memory_space<vmem>>, vector<1x17xf32>,
    %c28 = arith.constant 28 : index
    %c0_168 = arith.constant 0 : index
    %136 = vector.load %arg16[%c28, %c0_168] : memref<32x17xf32, #tpu.memory_space<vmem>>, vector<1x4xf32>
    %c14_169 = arith.constant 14 : index
    %c28_170 = arith.constant 28 : index
    %137 = vector.load %arg17[%c14_169, %c28_170] : memref<17x32xf32, #tpu.memory_space<vmem>>, vector<1x4xf32>
    tpu.vector_store %arg17[%c14_169, %c28_170], %136 {strides = array<i32>} : memref<17x32xf32, #tpu.memory_space<vmem>>, vector<1x4xf32>,
    %c28_171 = arith.constant 28 : index
    %c4_172 = arith.constant 4 : index
    %138 = vector.load %arg16[%c28_171, %c4_172] : memref<32x17xf32, #tpu.memory_space<vmem>>, vector<1x13xf32>
    %c15_173 = arith.constant 15 : index
    %c0_174 = arith.constant 0 : index
    %139 = vector.load %arg17[%c15_173, %c0_174] : memref<17x32xf32, #tpu.memory_space<vmem>>, vector<1x13xf32>
    tpu.vector_store %arg17[%c15_173, %c0_174], %138 {strides = array<i32>} : memref<17x32xf32, #tpu.memory_space<vmem>>, vector<1x13xf32>,
    %c29_175 = arith.constant 29 : index
    %c0_176 = arith.constant 0 : index
    %140 = vector.load %arg16[%c29_175, %c0_176] : memref<32x17xf32, #tpu.memory_space<vmem>>, vector<1x17xf32>
    %c15_177 = arith.constant 15 : index
    %c13_178 = arith.constant 13 : index
    %141 = vector.load %arg17[%c15_177, %c13_178] : memref<17x32xf32, #tpu.memory_space<vmem>>, vector<1x17xf32>
    tpu.vector_store %arg17[%c15_177, %c13_178], %140 {strides = array<i32>} : memref<17x32xf32, #tpu.memory_space<vmem>>, vector<1x17xf32>,
    %c30 = arith.constant 30 : index
    %c0_179 = arith.constant 0 : index
    %142 = vector.load %arg16[%c30, %c0_179] : memref<32x17xf32, #tpu.memory_space<vmem>>, vector<1x2xf32>
    %c15_180 = arith.constant 15 : index
    %c30_181 = arith.constant 30 : index
    %143 = vector.load %arg17[%c15_180, %c30_181] : memref<17x32xf32, #tpu.memory_space<vmem>>, vector<1x2xf32>
    tpu.vector_store %arg17[%c15_180, %c30_181], %142 {strides = array<i32>} : memref<17x32xf32, #tpu.memory_space<vmem>>, vector<1x2xf32>,
    %c30_182 = arith.constant 30 : index
    %c2_183 = arith.constant 2 : index
    %144 = vector.load %arg16[%c30_182, %c2_183] : memref<32x17xf32, #tpu.memory_space<vmem>>, vector<1x15xf32>
    %c16_184 = arith.constant 16 : index
    %c0_185 = arith.constant 0 : index
    %145 = vector.load %arg17[%c16_184, %c0_185] : memref<17x32xf32, #tpu.memory_space<vmem>>, vector<1x15xf32>
    tpu.vector_store %arg17[%c16_184, %c0_185], %144 {strides = array<i32>} : memref<17x32xf32, #tpu.memory_space<vmem>>, vector<1x15xf32>,
    %c31_186 = arith.constant 31 : index
    %c0_187 = arith.constant 0 : index
    %146 = vector.load %arg16[%c31_186, %c0_187] : memref<32x17xf32, #tpu.memory_space<vmem>>, vector<1x17xf32>
    %c16_188 = arith.constant 16 : index
    %c15_189 = arith.constant 15 : index
    %147 = vector.load %arg17[%c16_188, %c15_189] : memref<17x32xf32, #tpu.memory_space<vmem>>, vector<1x17xf32>
    tpu.vector_store %arg17[%c16_188, %c15_189], %146 {strides = array<i32>} : memref<17x32xf32, #tpu.memory_space<vmem>>, vector<1x17xf32>,
    %c0_190 = arith.constant 0 : index
    %c0_191 = arith.constant 0 : index
    %148 = vector.load %arg17[%c0_190, %c0_191] : memref<17x32xf32, #tpu.memory_space<vmem>>, vector<17x32xf32>
    %c0_192 = arith.constant 0 : index
    %c0_193 = arith.constant 0 : index
    %149 = vector.load %arg5[%c0_192, %c0_193] : memref<32x32xf32, #tpu.memory_space<vmem>>, vector<32x32xf32>
    %cst_194 = arith.constant dense<0.000000e+00> : vector<17x32xf32>
    %150 = tpu.matmul %148, %149, %cst_194 {dimension_numbers = #tpu.dot_dimension_numbers<[1], [0], [0], [1], [0, 0, 1, 1], [], []>} : vector<17x32xf32>, vector<32x32xf32>, vector<17x32xf32> -> vector<17x32xf32>
    %c0_195 = arith.constant 0 : index
    %c0_196 = arith.constant 0 : index
    %151 = vector.load %arg6[%c0_195, %c0_196] : memref<1x32xf32, #tpu.memory_space<vmem>>, vector<1x32xf32>
    %152 = vector.broadcast %151 : vector<1x32xf32> to vector<17x32xf32>
    %153 = arith.addf %150, %152 : vector<17x32xf32>
    %cst_197 = arith.constant 2.000000e+00 : f32
    %154 = vector.broadcast %cst_197 : f32 to vector<17x32xf32>
    %155 = arith.mulf %154, %153 : vector<17x32xf32>
    %c0_198 = arith.constant 0 : index
    %c0_199 = arith.constant 0 : index
    %156 = vector.load %arg7[%c0_198, %c0_199] : memref<1x32xf32, #tpu.memory_space<vmem>>, vector<1x32xf32>
    %c0_200 = arith.constant 0 : index
    %c0_201 = arith.constant 0 : index
    %157 = vector.load %arg8[%c0_200, %c0_201] : memref<1x32xf32, #tpu.memory_space<vmem>>, vector<1x32xf32>
    %cst_202 = arith.constant dense<0.000000e+00> : vector<17xf32>
    %158 = vector.multi_reduction <add>, %155, %cst_202 [1] : vector<17x32xf32> to vector<17xf32>
    %159 = vector.shape_cast %158 : vector<17xf32> to vector<17x1xf32>
    %cst_203 = arith.constant 3.200000e+01 : f32
    %160 = vector.broadcast %cst_203 : f32 to vector<17x1xf32>
    %161 = arith.divf %159, %160 : vector<17x1xf32>
    %162 = vector.broadcast %161 : vector<17x1xf32> to vector<17x32xf32>
    %163 = arith.subf %155, %162 : vector<17x32xf32>
    %164 = arith.mulf %163, %163 : vector<17x32xf32>
    %cst_204 = arith.constant dense<0.000000e+00> : vector<17xf32>
    %165 = vector.multi_reduction <add>, %164, %cst_204 [1] : vector<17x32xf32> to vector<17xf32>
    %166 = vector.shape_cast %165 : vector<17xf32> to vector<17x1xf32>
    %cst_205 = arith.constant 3.200000e+01 : f32
    %167 = vector.broadcast %cst_205 : f32 to vector<17x1xf32>
    %168 = arith.divf %166, %167 : vector<17x1xf32>
    %169 = vector.broadcast %161 : vector<17x1xf32> to vector<17x32xf32>
    %170 = arith.subf %155, %169 : vector<17x32xf32>
    %cst_206 = arith.constant 9.99999974E-6 : f32
    %171 = vector.broadcast %cst_206 : f32 to vector<17x1xf32>
    %172 = arith.addf %168, %171 : vector<17x1xf32>
    %173 = math.rsqrt %172 : vector<17x1xf32>
    %174 = vector.broadcast %173 : vector<17x1xf32> to vector<17x32xf32>
    %175 = arith.mulf %170, %174 : vector<17x32xf32>
    %176 = vector.broadcast %156 : vector<1x32xf32> to vector<17x32xf32>
    %177 = arith.mulf %175, %176 : vector<17x32xf32>
    %178 = vector.broadcast %157 : vector<1x32xf32> to vector<17x32xf32>
    %179 = arith.addf %177, %178 : vector<17x32xf32>
    %c0_207 = arith.constant 0 : index
    %c0_208 = arith.constant 0 : index
    %180 = vector.load %arg9[%c0_207, %c0_208] : memref<32x128xf32, #tpu.memory_space<vmem>>, vector<32x128xf32>
    %cst_209 = arith.constant dense<0.000000e+00> : vector<17x128xf32>
    %181 = tpu.matmul %179, %180, %cst_209 {dimension_numbers = #tpu.dot_dimension_numbers<[1], [0], [0], [1], [0, 0, 1, 1], [], []>} : vector<17x32xf32>, vector<32x128xf32>, vector<17x128xf32> -> vector<17x128xf32>
    %c0_210 = arith.constant 0 : index
    %c0_211 = arith.constant 0 : index
    %182 = vector.load %arg10[%c0_210, %c0_211] : memref<1x128xf32, #tpu.memory_space<vmem>>, vector<1x128xf32>
    %183 = vector.broadcast %182 : vector<1x128xf32> to vector<17x128xf32>
    %184 = arith.addf %181, %183 : vector<17x128xf32>
    %cst_212 = arith.constant 5.000000e-01 : f32
    %185 = vector.broadcast %cst_212 : f32 to vector<17x128xf32>
    %186 = arith.mulf %185, %184 : vector<17x128xf32>
    %cst_213 = arith.constant 0.707106769 : f32
    %187 = vector.broadcast %cst_213 : f32 to vector<17x128xf32>
    %188 = arith.mulf %184, %187 : vector<17x128xf32>
    %cst_214 = arith.constant 0.000000e+00 : f32
    %189 = vector.broadcast %cst_214 : f32 to vector<17x128xf32>
    %190 = arith.cmpf oge, %188, %189 : vector<17x128xf32>
    %cst_215 = arith.constant 1.000000e+00 : f32
    %cst_216 = arith.constant -1.000000e+00 : f32
    %191 = vector.broadcast %cst_215 : f32 to vector<17x128xf32>
    %192 = vector.broadcast %cst_216 : f32 to vector<17x128xf32>
    %193 = arith.select %190, %191, %192 : vector<17x128xi1>, vector<17x128xf32>
    %194 = math.absf %188 : vector<17x128xf32>
    %cst_217 = arith.constant 0.327591091 : f32
    %195 = vector.broadcast %cst_217 : f32 to vector<17x128xf32>
    %196 = arith.mulf %195, %194 : vector<17x128xf32>
    %cst_218 = arith.constant 1.000000e+00 : f32
    %197 = vector.broadcast %cst_218 : f32 to vector<17x128xf32>
    %198 = arith.addf %197, %196 : vector<17x128xf32>
    %cst_219 = arith.constant 1.000000e+00 : f32
    %199 = vector.broadcast %cst_219 : f32 to vector<17x128xf32>
    %200 = arith.divf %199, %198 : vector<17x128xf32>
    %cst_220 = arith.constant 1.06140542 : f32
    %201 = vector.broadcast %cst_220 : f32 to vector<17x128xf32>
    %202 = arith.mulf %201, %200 : vector<17x128xf32>
    %cst_221 = arith.constant -1.45315206 : f32
    %203 = vector.broadcast %cst_221 : f32 to vector<17x128xf32>
    %204 = arith.addf %202, %203 : vector<17x128xf32>
    %205 = arith.mulf %204, %200 : vector<17x128xf32>
    %cst_222 = arith.constant 1.42141378 : f32
    %206 = vector.broadcast %cst_222 : f32 to vector<17x128xf32>
    %207 = arith.addf %205, %206 : vector<17x128xf32>
    %208 = arith.mulf %207, %200 : vector<17x128xf32>
    %cst_223 = arith.constant -0.284496725 : f32
    %209 = vector.broadcast %cst_223 : f32 to vector<17x128xf32>
    %210 = arith.addf %208, %209 : vector<17x128xf32>
    %211 = arith.mulf %210, %200 : vector<17x128xf32>
    %cst_224 = arith.constant 0.254829586 : f32
    %212 = vector.broadcast %cst_224 : f32 to vector<17x128xf32>
    %213 = arith.addf %211, %212 : vector<17x128xf32>
    %214 = arith.mulf %213, %200 : vector<17x128xf32>
    %cst_225 = arith.constant 0.000000e+00 : f32
    %215 = vector.broadcast %cst_225 : f32 to vector<17x128xf32>
    %216 = arith.subf %215, %194 : vector<17x128xf32>
    %217 = arith.mulf %216, %194 : vector<17x128xf32>
    %218 = math.exp %217 : vector<17x128xf32>
    %219 = arith.mulf %214, %218 : vector<17x128xf32>
    %cst_226 = arith.constant 1.000000e+00 : f32
    %220 = vector.broadcast %cst_226 : f32 to vector<17x128xf32>
    %221 = arith.subf %220, %219 : vector<17x128xf32>
    %222 = arith.mulf %193, %221 : vector<17x128xf32>
    %cst_227 = arith.constant 1.000000e+00 : f32
    %223 = vector.broadcast %cst_227 : f32 to vector<17x128xf32>
    %224 = arith.addf %223, %222 : vector<17x128xf32>
    %225 = arith.mulf %186, %224 : vector<17x128xf32>
    %c0_228 = arith.constant 0 : index
    %c0_229 = arith.constant 0 : index
    %226 = vector.load %arg11[%c0_228, %c0_229] : memref<128x32xf32, #tpu.memory_space<vmem>>, vector<128x32xf32>
    %cst_230 = arith.constant dense<0.000000e+00> : vector<17x32xf32>
    %227 = tpu.matmul %225, %226, %cst_230 {dimension_numbers = #tpu.dot_dimension_numbers<[1], [0], [0], [1], [0, 0, 1, 1], [], []>} : vector<17x128xf32>, vector<128x32xf32>, vector<17x32xf32> -> vector<17x32xf32>
    %c0_231 = arith.constant 0 : index
    %c0_232 = arith.constant 0 : index
    %228 = vector.load %arg12[%c0_231, %c0_232] : memref<1x32xf32, #tpu.memory_space<vmem>>, vector<1x32xf32>
    %229 = vector.broadcast %228 : vector<1x32xf32> to vector<17x32xf32>
    %230 = arith.addf %227, %229 : vector<17x32xf32>
    %231 = arith.addf %155, %230 : vector<17x32xf32>
    %c0_233 = arith.constant 0 : index
    %c0_234 = arith.constant 0 : index
    %c0_235 = arith.constant 0 : index
    %232 = vector.load %arg13[%c0_233, %c0_234, %c0_235] : memref<1x17x32xf32, #tpu.memory_space<vmem>>, vector<1x17x32xf32>
    %233 = vector.shape_cast %232 : vector<1x17x32xf32> to vector<17x32xf32>
    %234 = vector.shape_cast %231 : vector<17x32xf32> to vector<1x17x32xf32>
    tpu.vector_store %arg13[%c0_233, %c0_234, %c0_235], %234 {strides = array<i32>} : memref<1x17x32xf32, #tpu.memory_space<vmem>>, vector<1x17x32xf32>,
    return
  }
  func.func @transform_0(%arg0: i32) -> (i32, i32, i32) {
    %c0_i32 = arith.constant 0 : i32
    %c0_i32_0 = arith.constant 0 : i32
    %c0_i32_1 = arith.constant 0 : i32
    return %arg0, %c0_i32, %c0_i32_0 : i32, i32, i32
  }
  func.func @transform_1(%arg0: i32) -> (i32, i32) {
    %c0_i32 = arith.constant 0 : i32
    %c0_i32_0 = arith.constant 0 : i32
    %c0_i32_1 = arith.constant 0 : i32
    return %c0_i32, %c0_i32_0 : i32, i32
  }
  func.func @transform_2(%arg0: i32) -> (i32, i32) {
    %c0_i32 = arith.constant 0 : i32
    %c0_i32_0 = arith.constant 0 : i32
    %c0_i32_1 = arith.constant 0 : i32
    return %c0_i32, %c0_i32_0 : i32, i32
  }
  func.func @transform_3(%arg0: i32) -> (i32, i32) {
    %c0_i32 = arith.constant 0 : i32
    %c0_i32_0 = arith.constant 0 : i32
    %c0_i32_1 = arith.constant 0 : i32
    return %c0_i32, %c0_i32_0 : i32, i32
  }
  func.func @transform_4(%arg0: i32) -> (i32, i32) {
    %c0_i32 = arith.constant 0 : i32
    %c0_i32_0 = arith.constant 0 : i32
    %c0_i32_1 = arith.constant 0 : i32
    return %c0_i32, %c0_i32_0 : i32, i32
  }
  func.func @transform_5(%arg0: i32) -> (i32, i32) {
    %c0_i32 = arith.constant 0 : i32
    %c0_i32_0 = arith.constant 0 : i32
    %c0_i32_1 = arith.constant 0 : i32
    return %c0_i32, %c0_i32_0 : i32, i32
  }
  func.func @transform_6(%arg0: i32) -> (i32, i32) {
    %c0_i32 = arith.constant 0 : i32
    %c0_i32_0 = arith.constant 0 : i32
    %c0_i32_1 = arith.constant 0 : i32
    return %c0_i32, %c0_i32_0 : i32, i32
  }
  func.func @transform_7(%arg0: i32) -> (i32, i32) {
    %c0_i32 = arith.constant 0 : i32
    %c0_i32_0 = arith.constant 0 : i32
    %c0_i32_1 = arith.constant 0 : i32
    return %c0_i32, %c0_i32_0 : i32, i32
  }
  func.func @transform_8(%arg0: i32) -> (i32, i32) {
    %c0_i32 = arith.constant 0 : i32
    %c0_i32_0 = arith.constant 0 : i32
    %c0_i32_1 = arith.constant 0 : i32
    return %c0_i32, %c0_i32_0 : i32, i32
  }
  func.func @transform_9(%arg0: i32) -> (i32, i32) {
    %c0_i32 = arith.constant 0 : i32
    %c0_i32_0 = arith.constant 0 : i32
    %c0_i32_1 = arith.constant 0 : i32
    return %c0_i32, %c0_i32_0 : i32, i32
  }
  func.func @transform_10(%arg0: i32) -> (i32, i32) {
    %c0_i32 = arith.constant 0 : i32
    %c0_i32_0 = arith.constant 0 : i32
    %c0_i32_1 = arith.constant 0 : i32
    return %c0_i32, %c0_i32_0 : i32, i32
  }
  func.func @transform_11(%arg0: i32) -> (i32, i32) {
    %c0_i32 = arith.constant 0 : i32
    %c0_i32_0 = arith.constant 0 : i32
    %c0_i32_1 = arith.constant 0 : i32
    return %c0_i32, %c0_i32_0 : i32, i32
  }
  func.func @transform_12(%arg0: i32) -> (i32, i32, i32) {
    %c0_i32 = arith.constant 0 : i32
    %c0_i32_0 = arith.constant 0 : i32
    %c0_i32_1 = arith.constant 0 : i32
    return %arg0, %c0_i32, %c0_i32_0 : i32, i32, i32
  }
  func.func @transform_13(%arg0: i32) -> (i32, i32, i32) {
    %c0_i32 = arith.constant 0 : i32
    %c0_i32_0 = arith.constant 0 : i32
    %c0_i32_1 = arith.constant 0 : i32
    return %arg0, %c0_i32, %c0_i32_0 : i32, i32, i32
  }
}

</mosaic_0001>

<llo_original>
// kernel: tpu_custom_call.1
$region0: #{tpu_custom_call.1}
  #allocation0 [shape = 'u32[]', space=smem, size = 0x4, offset = 0x4, fixed_abs, tag = 'smem constant byte address 0x4 - core index']
  #allocation1 [shape = 'u32[144,128]{1,0:T(1,128)}', space=vmem, size = 0x12000, scoped, tag = 'internal scratch']
  #allocation2 [shape = 'f32[17,96]{1,0:T(8,128)}', space=vmem, size = 0x3000, scoped, tag = 'scratch operand']
  #allocation3 [shape = 'f32[32,17]{1,0:T(8,128)}', space=vmem, size = 0x4000, scoped, tag = 'scratch operand']
  #allocation4 [shape = 'f32[17,32]{1,0:T(8,128)}', space=vmem, size = 0x3000, scoped, tag = 'scratch operand']
  %s0 = inlined_call_operand.vmem [shape: f32[2,17,32], index: 0, kind: input, shape index: {}]
  %s1 = inlined_call_operand.vmem [shape: f32[1,32], index: 1, kind: input, shape index: {}]
  %s2 = inlined_call_operand.vmem [shape: f32[1,32], index: 2, kind: input, shape index: {}]
  %s3 = inlined_call_operand.vmem [shape: f32[32,96], index: 3, kind: input, shape index: {}]
  %s4 = inlined_call_operand.vmem [shape: f32[32,32], index: 4, kind: input, shape index: {}]
  %s5 = inlined_call_operand.vmem [shape: f32[1,32], index: 5, kind: input, shape index: {}]
  %s6 = inlined_call_operand.vmem [shape: f32[1,32], index: 6, kind: input, shape index: {}]
  %s7 = inlined_call_operand.vmem [shape: f32[1,32], index: 7, kind: input, shape index: {}]
  %s8 = inlined_call_operand.vmem [shape: f32[32,128], index: 8, kind: input, shape index: {}]
  %s9 = inlined_call_operand.vmem [shape: f32[1,128], index: 9, kind: input, shape index: {}]
  %s10 = inlined_call_operand.vmem [shape: f32[128,32], index: 10, kind: input, shape index: {}]
  %s11 = inlined_call_operand.vmem [shape: f32[1,32], index: 11, kind: input, shape index: {}]
  %s12 = inlined_call_operand.vmem [shape: f32[2,17,32], index: 12, kind: output, shape index: {0}]
  %s13 = inlined_call_operand.hbm [shape: f32[2,1,17], index: 13, kind: output, shape index: {1}]
  %14 = xla_tuple %s12, %s13
  %s15 = sld [smem:[#allocation0]]
  $region89: #{tpu_custom_call.1} parent=0
    _
  %s17 = ssub.s32 1, %s15
  %s18 = scalar_select 0, %s17, %s15
  $region1: #{tpu_custom_call.1} parent=0
    #allocation5 [shape = 'u8[1024]{0}', space=vmem, size = 0x400, scoped, tag = 'output window, operand 1']
    #allocation6 [shape = 's32[2]{0}', space=sflag, size = 0x8, scoped, tag = 'scoped memory for tpu_custom_call.1']
    %19 = vsyncpa [#allocation6], 0
    %s20 = scalar_lea.sflag [#allocation6], 1
    %21 = vsyncpa %s20, 0
    loop: start=0, step=1, limit=4
    $region2: #{tpu_custom_call.1} parent=1 // loop_pre_header
      _
    $region3: #{tpu_custom_call.1} parent=1 // loop_header
      %s23 = sphi 0, %s27
      %p24 = scmp.ge.s32.totalorder %s23, 4
      %s33 = sphi 0, %s35
      %s36 = sphi 0, %s33
      %s37 = sphi 0, %s36
      %s53 = sphi 0, %s37
      %s57 = sphi 0, %s57
      %s59 = sphi 0, %s57
      %s60 = sphi 0, %s59
      %s74 = sphi 0, %s60
      %s78 = sphi 0, %s78
      %s80 = sphi 0, %s78
      %s81 = sphi 0, %s80
      %s95 = sphi 0, %s81
      %s99 = sphi 0, %s99
      %s101 = sphi 0, %s99
      %s102 = sphi 0, %s101
      %s116 = sphi 0, %s102
      %s120 = sphi 0, %s120
      %s122 = sphi 0, %s120
      %s123 = sphi 0, %s122
      %s137 = sphi 0, %s123
      %s141 = sphi 0, %s141
      %s143 = sphi 0, %s141
      %s144 = sphi 0, %s143
      %s158 = sphi 0, %s144
      %s162 = sphi 0, %s162
      %s164 = sphi 0, %s162
      %s165 = sphi 0, %s164
      %s179 = sphi 0, %s165
      %s183 = sphi 0, %s183
      %s185 = sphi 0, %s183
      %s186 = sphi 0, %s185
      %s200 = sphi 0, %s186
      %s204 = sphi 0, %s204
      %s206 = sphi 0, %s204
      %s207 = sphi 0, %s206
      %s221 = sphi 0, %s207
      %s225 = sphi 0, %s225
      %s227 = sphi 0, %s225
      %s228 = sphi 0, %s227
      %s242 = sphi 0, %s228
      %s246 = sphi 0, %s246
      %s248 = sphi 0, %s246
      %s249 = sphi 0, %s248
      %s263 = sphi 0, %s249
      %s267 = sphi 0, %s267
      %s269 = sphi 0, %s267
      %s270 = sphi 0, %s269
      %s284 = sphi 0, %s270
      %s290 = sphi 0, %s292
      %s293 = sphi 0, %s290
      %s294 = sphi 0, %s293
      %s310 = sphi 0, %s294
      %s316 = sphi 0, %s318
      %s319 = sphi 0, %s316
      %s320 = sphi 0, %s319
      %s336 = sphi 0, %s320
    $region4: #{tpu_custom_call.1} parent=1 // loop_header_branch
      %26 = sbr.rel (%p24) target = $region8
    $region5: #{tpu_custom_call.1} parent=1 // loop_body
      %s28 = ssub.s32 %s23, 1
      %s29 = ssub.s32 %s23, 2
      %s30 = sadd.s32 %s23, 1
      %s31 = ssub.s32 %s23, %s30
      %p32 = scmp.eq.s32.totalorder %s31, 0
      %s34 = sadd.s32 %s33, 1
      %s35 = scalar_select %p32, %s33, %s34
      %p38 = pneg %p32
      %p39 = scmp.eq.s32.totalorder %s23, 1
      %p40 = por %p38, %p39
      %p41 = scmp.ne.s32.totalorder %s33, %s36
      %p42 = scmp.eq.s32.totalorder %s23, 0
      %p43 = por %p41, %p42
      %p44 = scmp.ne.s32.totalorder %s33, %s36
      %p45 = scmp.eq.s32.totalorder %s28, 1
      %p46 = por %p44, %p45
      %p47 = scmp.ne.s32.totalorder %s36, %s37
      %p48 = scmp.eq.s32.totalorder %s28, 0
      %p49 = por %p47, %p48
      %p50 = scmp.ne.s32.totalorder %s36, %s37
      %p51 = scmp.eq.s32.totalorder %s29, 1
      %p52 = por %p50, %p51
      %p54 = scmp.ne.s32.totalorder %s37, %s53
      %p55 = scmp.eq.s32.totalorder %s29, 0
      %p56 = por %p54, %p55
      %s58 = sadd.s32 %s57, 1
      %p61 = scmp.eq.s32.totalorder %s23, 1
      %p62 = scmp.ne.s32.totalorder %s57, %s59
      %p63 = scmp.eq.s32.totalorder %s23, 0
      %p64 = por %p62, %p63
      %p65 = scmp.ne.s32.totalorder %s57, %s59
      %p66 = scmp.eq.s32.totalorder %s28, 1
      %p67 = por %p65, %p66
      %p68 = scmp.ne.s32.totalorder %s59, %s60
      %p69 = scmp.eq.s32.totalorder %s28, 0
      %p70 = por %p68, %p69
      %p71 = scmp.ne.s32.totalorder %s59, %s60
      %p72 = scmp.eq.s32.totalorder %s29, 1
      %p73 = por %p71, %p72
      %p75 = scmp.ne.s32.totalorder %s60, %s74
      %p76 = scmp.eq.s32.totalorder %s29, 0
      %p77 = por %p75, %p76
      %s79 = sadd.s32 %s78, 1
      %p82 = scmp.eq.s32.totalorder %s23, 1
      %p83 = scmp.ne.s32.totalorder %s78, %s80
      %p84 = scmp.eq.s32.totalorder %s23, 0
      %p85 = por %p83, %p84
      %p86 = scmp.ne.s32.totalorder %s78, %s80
      %p87 = scmp.eq.s32.totalorder %s28, 1
      %p88 = por %p86, %p87
      %p89 = scmp.ne.s32.totalorder %s80, %s81
      %p90 = scmp.eq.s32.totalorder %s28, 0
      %p91 = por %p89, %p90
      %p92 = scmp.ne.s32.totalorder %s80, %s81
      %p93 = scmp.eq.s32.totalorder %s29, 1
      %p94 = por %p92, %p93
      %p96 = scmp.ne.s32.totalorder %s81, %s95
      %p97 = scmp.eq.s32.totalorder %s29, 0
      %p98 = por %p96, %p97
      %s100 = sadd.s32 %s99, 1
      %p103 = scmp.eq.s32.totalorder %s23, 1
      %p104 = scmp.ne.s32.totalorder %s99, %s101
      %p105 = scmp.eq.s32.totalorder %s23, 0
      %p106 = por %p104, %p105
      %p107 = scmp.ne.s32.totalorder %s99, %s101
      %p108 = scmp.eq.s32.totalorder %s28, 1
      %p109 = por %p107, %p108
      %p110 = scmp.ne.s32.totalorder %s101, %s102
      %p111 = scmp.eq.s32.totalorder %s28, 0
      %p112 = por %p110, %p111
      %p113 = scmp.ne.s32.totalorder %s101, %s102
      %p114 = scmp.eq.s32.totalorder %s29, 1
      %p115 = por %p113, %p114
      %p117 = scmp.ne.s32.totalorder %s102, %s116
      %p118 = scmp.eq.s32.totalorder %s29, 0
      %p119 = por %p117, %p118
      %s121 = sadd.s32 %s120, 1
      %p124 = scmp.eq.s32.totalorder %s23, 1
      %p125 = scmp.ne.s32.totalorder %s120, %s122
      %p126 = scmp.eq.s32.totalorder %s23, 0
      %p127 = por %p125, %p126
      %p128 = scmp.ne.s32.totalorder %s120, %s122
      %p129 = scmp.eq.s32.totalorder %s28, 1
      %p130 = por %p128, %p129
      %p131 = scmp.ne.s32.totalorder %s122, %s123
      %p132 = scmp.eq.s32.totalorder %s28, 0
      %p133 = por %p131, %p132
      %p134 = scmp.ne.s32.totalorder %s122, %s123
      %p135 = scmp.eq.s32.totalorder %s29, 1
      %p136 = por %p134, %p135
      %p138 = scmp.ne.s32.totalorder %s123, %s137
      %p139 = scmp.eq.s32.totalorder %s29, 0
      %p140 = por %p138, %p139
      %s142 = sadd.s32 %s141, 1
      %p145 = scmp.eq.s32.totalorder %s23, 1
      %p146 = scmp.ne.s32.totalorder %s141, %s143
      %p147 = scmp.eq.s32.totalorder %s23, 0
      %p148 = por %p146, %p147
      %p149 = scmp.ne.s32.totalorder %s141, %s143
      %p150 = scmp.eq.s32.totalorder %s28, 1
      %p151 = por %p149, %p150
      %p152 = scmp.ne.s32.totalorder %s143, %s144
      %p153 = scmp.eq.s32.totalorder %s28, 0
      %p154 = por %p152, %p153
      %p155 = scmp.ne.s32.totalorder %s143, %s144
      %p156 = scmp.eq.s32.totalorder %s29, 1
      %p157 = por %p155, %p156
      %p159 = scmp.ne.s32.totalorder %s144, %s158
      %p160 = scmp.eq.s32.totalorder %s29, 0
      %p161 = por %p159, %p160
      %s163 = sadd.s32 %s162, 1
      %p166 = scmp.eq.s32.totalorder %s23, 1
      %p167 = scmp.ne.s32.totalorder %s162, %s164
      %p168 = scmp.eq.s32.totalorder %s23, 0
      %p169 = por %p167, %p168
      %p170 = scmp.ne.s32.totalorder %s162, %s164
      %p171 = scmp.eq.s32.totalorder %s28, 1
      %p172 = por %p170, %p171
      %p173 = scmp.ne.s32.totalorder %s164, %s165
      %p174 = scmp.eq.s32.totalorder %s28, 0
      %p175 = por %p173, %p174
      %p176 = scmp.ne.s32.totalorder %s164, %s165
      %p177 = scmp.eq.s32.totalorder %s29, 1
      %p178 = por %p176, %p177
      %p180 = scmp.ne.s32.totalorder %s165, %s179
      %p181 = scmp.eq.s32.totalorder %s29, 0
      %p182 = por %p180, %p181
      %s184 = sadd.s32 %s183, 1
      %p187 = scmp.eq.s32.totalorder %s23, 1
      %p188 = scmp.ne.s32.totalorder %s183, %s185
      %p189 = scmp.eq.s32.totalorder %s23, 0
      %p190 = por %p188, %p189
      %p191 = scmp.ne.s32.totalorder %s183, %s185
      %p192 = scmp.eq.s32.totalorder %s28, 1
      %p193 = por %p191, %p192
      %p194 = scmp.ne.s32.totalorder %s185, %s186
      %p195 = scmp.eq.s32.totalorder %s28, 0
      %p196 = por %p194, %p195
      %p197 = scmp.ne.s32.totalorder %s185, %s186
      %p198 = scmp.eq.s32.totalorder %s29, 1
      %p199 = por %p197, %p198
      %p201 = scmp.ne.s32.totalorder %s186, %s200
      %p202 = scmp.eq.s32.totalorder %s29, 0
      %p203 = por %p201, %p202
      %s205 = sadd.s32 %s204, 1
      %p208 = scmp.eq.s32.totalorder %s23, 1
      %p209 = scmp.ne.s32.totalorder %s204, %s206
      %p210 = scmp.eq.s32.totalorder %s23, 0
      %p211 = por %p209, %p210
      %p212 = scmp.ne.s32.totalorder %s204, %s206
      %p213 = scmp.eq.s32.totalorder %s28, 1
      %p214 = por %p212, %p213
      %p215 = scmp.ne.s32.totalorder %s206, %s207
      %p216 = scmp.eq.s32.totalorder %s28, 0
      %p217 = por %p215, %p216
      %p218 = scmp.ne.s32.totalorder %s206, %s207
      %p219 = scmp.eq.s32.totalorder %s29, 1
      %p220 = por %p218, %p219
      %p222 = scmp.ne.s32.totalorder %s207, %s221
      %p223 = scmp.eq.s32.totalorder %s29, 0
      %p224 = por %p222, %p223
      %s226 = sadd.s32 %s225, 1
      %p229 = scmp.eq.s32.totalorder %s23, 1
      %p230 = scmp.ne.s32.totalorder %s225, %s227
      %p231 = scmp.eq.s32.totalorder %s23, 0
      %p232 = por %p230, %p231
      %p233 = scmp.ne.s32.totalorder %s225, %s227
      %p234 = scmp.eq.s32.totalorder %s28, 1
      %p235 = por %p233, %p234
      %p236 = scmp.ne.s32.totalorder %s227, %s228
      %p237 = scmp.eq.s32.totalorder %s28, 0
      %p238 = por %p236, %p237
      %p239 = scmp.ne.s32.totalorder %s227, %s228
      %p240 = scmp.eq.s32.totalorder %s29, 1
      %p241 = por %p239, %p240
      %p243 = scmp.ne.s32.totalorder %s228, %s242
      %p244 = scmp.eq.s32.totalorder %s29, 0
      %p245 = por %p243, %p244
      %s247 = sadd.s32 %s246, 1
      %p250 = scmp.eq.s32.totalorder %s23, 1
      %p251 = scmp.ne.s32.totalorder %s246, %s248
      %p252 = scmp.eq.s32.totalorder %s23, 0
      %p253 = por %p251, %p252
      %p254 = scmp.ne.s32.totalorder %s246, %s248
      %p255 = scmp.eq.s32.totalorder %s28, 1
      %p256 = por %p254, %p255
      %p257 = scmp.ne.s32.totalorder %s248, %s249
      %p258 = scmp.eq.s32.totalorder %s28, 0
      %p259 = por %p257, %p258
      %p260 = scmp.ne.s32.totalorder %s248, %s249
      %p261 = scmp.eq.s32.totalorder %s29, 1
      %p262 = por %p260, %p261
      %p264 = scmp.ne.s32.totalorder %s249, %s263
      %p265 = scmp.eq.s32.totalorder %s29, 0
      %p266 = por %p264, %p265
      %s268 = sadd.s32 %s267, 1
      %p271 = scmp.eq.s32.totalorder %s23, 1
      %p272 = scmp.ne.s32.totalorder %s267, %s269
      %p273 = scmp.eq.s32.totalorder %s23, 0
      %p274 = por %p272, %p273
      %p275 = scmp.ne.s32.totalorder %s267, %s269
      %p276 = scmp.eq.s32.totalorder %s28, 1
      %p277 = por %p275, %p276
      %p278 = scmp.ne.s32.totalorder %s269, %s270
      %p279 = scmp.eq.s32.totalorder %s28, 0
      %p280 = por %p278, %p279
      %p281 = scmp.ne.s32.totalorder %s269, %s270
      %p282 = scmp.eq.s32.totalorder %s29, 1
      %p283 = por %p281, %p282
      %p285 = scmp.ne.s32.totalorder %s270, %s284
      %p286 = scmp.eq.s32.totalorder %s29, 0
      %p287 = por %p285, %p286
      %s288 = ssub.s32 %s23, %s30
      %p289 = scmp.eq.s32.totalorder %s288, 0
      %s291 = sadd.s32 %s290, 1
      %s292 = scalar_select %p289, %s290, %s291
      %p295 = pneg %p289
      %p296 = scmp.eq.s32.totalorder %s23, 1
      %p297 = por %p295, %p296
      %p298 = scmp.ne.s32.totalorder %s290, %s293
      %p299 = scmp.eq.s32.totalorder %s23, 0
      %p300 = por %p298, %p299
      %p301 = scmp.ne.s32.totalorder %s290, %s293
      %p302 = scmp.eq.s32.totalorder %s28, 1
      %p303 = por %p301, %p302
      %p304 = scmp.ne.s32.totalorder %s293, %s294
      %p305 = scmp.eq.s32.totalorder %s28, 0
      %p306 = por %p304, %p305
      %p307 = scmp.ne.s32.totalorder %s293, %s294
      %p308 = scmp.eq.s32.totalorder %s29, 1
      %p309 = por %p307, %p308
      %p311 = scmp.ne.s32.totalorder %s294, %s310
      %p312 = scmp.eq.s32.totalorder %s29, 0
      %p313 = por %p311, %p312
      %s314 = ssub.s32 %s23, %s30
      %p315 = scmp.eq.s32.totalorder %s314, 0
      %s317 = sadd.s32 %s316, 1
      %s318 = scalar_select %p315, %s316, %s317
      %p321 = pneg %p315
      %p322 = scmp.eq.s32.totalorder %s23, 1
      %p323 = por %p321, %p322
      %p324 = scmp.ne.s32.totalorder %s316, %s319
      %p325 = scmp.eq.s32.totalorder %s23, 0
      %p326 = por %p324, %p325
      %p327 = scmp.ne.s32.totalorder %s316, %s319
      %p328 = scmp.eq.s32.totalorder %s28, 1
      %p329 = por %p327, %p328
      %p330 = scmp.ne.s32.totalorder %s319, %s320
      %p331 = scmp.eq.s32.totalorder %s28, 0
      %p332 = por %p330, %p331
      %p333 = scmp.ne.s32.totalorder %s319, %s320
      %p334 = scmp.eq.s32.totalorder %s29, 1
      %p335 = por %p333, %p334
      %p337 = scmp.ne.s32.totalorder %s320, %s336
      %p338 = scmp.eq.s32.totalorder %s29, 0
      %p339 = por %p337, %p338
      %p340 = scmp.le.s32.totalorder 1, %s23
      %p341 = scmp.lt.s32.totalorder %s23, 3
      %p342 = pnand %p340, %p341
      %p343 = pneg %p342
      // Predicated region
      $region9: #{tpu_custom_call.1} parent=5 // pred_check
        _
      $region10: #{tpu_custom_call.1} parent=5 // pred_check_branch
        %345 = sbr.rel (%p342) target = $region12
      $region11: #{tpu_custom_call.1} parent=5 // pred_region
        %s346 = ssub.s32 %s23, 1
        // Predicated region
        $region13: #{tpu_custom_call.1} parent=11 // pred_check
          %p347 = pneg %p70
        $region14: #{tpu_custom_call.1} parent=11 // pred_check_branch
          %349 = sbr.rel (%p347) target = $region16
        $region15: #{tpu_custom_call.1} parent=11 // pred_region
          _
        $region16: #{tpu_custom_call.1} parent=11 // pred_fallthru
          _
        // Predicated region
        $region17: #{tpu_custom_call.1} parent=11 // pred_check
          %p350 = pneg %p91
        $region18: #{tpu_custom_call.1} parent=11 // pred_check_branch
          %352 = sbr.rel (%p350) target = $region20
        $region19: #{tpu_custom_call.1} parent=11 // pred_region
          _
        $region20: #{tpu_custom_call.1} parent=11 // pred_fallthru
          _
        // Predicated region
        $region21: #{tpu_custom_call.1} parent=11 // pred_check
          %p353 = pneg %p112
        $region22: #{tpu_custom_call.1} parent=11 // pred_check_branch
          %355 = sbr.rel (%p353) target = $region24
        $region23: #{tpu_custom_call.1} parent=11 // pred_region
          _
        $region24: #{tpu_custom_call.1} parent=11 // pred_fallthru
          _
        // Predicated region
        $region25: #{tpu_custom_call.1} parent=11 // pred_check
          %p356 = pneg %p133
        $region26: #{tpu_custom_call.1} parent=11 // pred_check_branch
          %358 = sbr.rel (%p356) target = $region28
        $region27: #{tpu_custom_call.1} parent=11 // pred_region
          _
        $region28: #{tpu_custom_call.1} parent=11 // pred_fallthru
          _
        // Predicated region
        $region29: #{tpu_custom_call.1} parent=11 // pred_check
          %p359 = pneg %p154
        $region30: #{tpu_custom_call.1} parent=11 // pred_check_branch
          %361 = sbr.rel (%p359) target = $region32
        $region31: #{tpu_custom_call.1} parent=11 // pred_region
          _
        $region32: #{tpu_custom_call.1} parent=11 // pred_fallthru
          _
        // Predicated region
        $region33: #{tpu_custom_call.1} parent=11 // pred_check
          %p362 = pneg %p175
        $region34: #{tpu_custom_call.1} parent=11 // pred_check_branch
          %364 = sbr.rel (%p362) target = $region36
        $region35: #{tpu_custom_call.1} parent=11 // pred_region
          _
        $region36: #{tpu_custom_call.1} parent=11 // pred_fallthru
          _
        // Predicated region
        $region37: #{tpu_custom_call.1} parent=11 // pred_check
          %p365 = pneg %p196
        $region38: #{tpu_custom_call.1} parent=11 // pred_check_branch
          %367 = sbr.rel (%p365) target = $region40
        $region39: #{tpu_custom_call.1} parent=11 // pred_region
          _
        $region40: #{tpu_custom_call.1} parent=11 // pred_fallthru
          _
        // Predicated region
        $region41: #{tpu_custom_call.1} parent=11 // pred_check
          %p368 = pneg %p217
        $region42: #{tpu_custom_call.1} parent=11 // pred_check_branch
          %370 = sbr.rel (%p368) target = $region44
        $region43: #{tpu_custom_call.1} parent=11 // pred_region
          _
        $region44: #{tpu_custom_call.1} parent=11 // pred_fallthru
          _
        // Predicated region
        $region45: #{tpu_custom_call.1} parent=11 // pred_check
          %p371 = pneg %p238
        $region46: #{tpu_custom_call.1} parent=11 // pred_check_branch
          %373 = sbr.rel (%p371) target = $region48
        $region47: #{tpu_custom_call.1} parent=11 // pred_region
          _
        $region48: #{tpu_custom_call.1} parent=11 // pred_fallthru
          _
        // Predicated region
        $region49: #{tpu_custom_call.1} parent=11 // pred_check
          %p374 = pneg %p259
        $region50: #{tpu_custom_call.1} parent=11 // pred_check_branch
          %376 = sbr.rel (%p374) target = $region52
        $region51: #{tpu_custom_call.1} parent=11 // pred_region
          _
        $region52: #{tpu_custom_call.1} parent=11 // pred_fallthru
          _
        // Predicated region
        $region53: #{tpu_custom_call.1} parent=11 // pred_check
          %p377 = pneg %p280
        $region54: #{tpu_custom_call.1} parent=11 // pred_check_branch
          %379 = sbr.rel (%p377) target = $region56
        $region55: #{tpu_custom_call.1} parent=11 // pred_region
          _
        $region56: #{tpu_custom_call.1} parent=11 // pred_fallthru
          _
      $region12: #{tpu_custom_call.1} parent=5 // pred_fallthru
        _
      %p380 = scmp.lt.s32.totalorder %s23, 2
      // Predicated region
      $region57: #{tpu_custom_call.1} parent=5 // pred_check
        %p381 = pneg %p380
      $region58: #{tpu_custom_call.1} parent=5 // pred_check_branch
        %383 = sbr.rel (%p381) target = $region60
      $region59: #{tpu_custom_call.1} parent=5 // pred_region
        // Predicated region
        $region61: #{tpu_custom_call.1} parent=59 // pred_check
          %p384 = pneg %p43
        $region62: #{tpu_custom_call.1} parent=59 // pred_check_branch
          %386 = sbr.rel (%p384) target = $region64
        $region63: #{tpu_custom_call.1} parent=59 // pred_region
          %p387 = scmp.lt.s32.totalorder %s23, 1
          %s388 = scalar_select %p387, %s23, 1
          %s389 = smul.addr %s388, 3
          %s390 = smul.addr %s389, 8
          %s391 = scalar_lea.vmem %s0, %s390
        $region64: #{tpu_custom_call.1} parent=59 // pred_fallthru
          _
      $region60: #{tpu_custom_call.1} parent=5 // pred_fallthru
        _
      %p392 = scmp.le.s32.totalorder 1, %s23
      %p393 = scmp.lt.s32.totalorder %s23, 3
      %p394 = pnand %p392, %p393
      %p395 = pneg %p394
      // Predicated region
      $region65: #{tpu_custom_call.1} parent=5 // pred_check
        _
      $region66: #{tpu_custom_call.1} parent=5 // pred_check_branch
        %397 = sbr.rel (%p394) target = $region68
      $region67: #{tpu_custom_call.1} parent=5 // pred_region
        %s398 = ssub.s32 %s23, 1
        %p399 = scmp.lt.s32.totalorder %s28, 1
        %s400 = scalar_select %p399, %s28, 1
        %s401 = smul.addr %s400, 3
        %s402 = smul.addr %s401, 8
        %s403 = scalar_lea.vmem %s0, %s402
        %p404 = pneg %p49
        %p405 = pneg %p46
        %p406 = pneg %p70
        %p407 = pneg %p67
        %p408 = pneg %p91
        %p409 = pneg %p88
        %p410 = pneg %p112
        %p411 = pneg %p109
        %p412 = pneg %p133
        %p413 = pneg %p130
        %p414 = pneg %p154
        %p415 = pneg %p151
        %p416 = pneg %p175
        %p417 = pneg %p172
        %p418 = pneg %p196
        %p419 = pneg %p193
        %p420 = pneg %p217
        %p421 = pneg %p214
        %p422 = pneg %p238
        %p423 = pneg %p235
        %p424 = pneg %p259
        %p425 = pneg %p256
        %p426 = pneg %p280
        %p427 = pneg %p277
        %p428 = pneg %p306
        %p429 = pneg %p303
        %p430 = scmp.lt.s32.totalorder %s28, 1
        %s431 = scalar_select %p430, %s28, 1
        %s432 = smul.addr %s431, 3
        %s433 = smul.addr %s432, 8
        %s434 = scalar_lea.vmem %s12, %s433
        %p435 = pneg %p332
        %p436 = pneg %p329
        %s437 = sand.u32 %s319, 1
        %s438 = scalar_lea.sflag [#allocation6], %s437
        %s439 = sand.u32 %s319, 1
        %s440 = scalar_lea.vmem [#allocation5], %s439
        %p441 = scmp.lt.s32.totalorder %s28, 1
        %s442 = scalar_select %p441, %s28, 1
        %s443 = smul.addr %s442, 3
        %s444 = smul.addr %s443, 8
        %s445 = scalar_lea.vmem %s0, %s444
        %p446 = scmp.lt.s32.totalorder %s28, 1
        %s447 = scalar_select %p446, %s28, 1
        %s448 = smul.addr %s447, 3
        %s449 = smul.addr %s448, 8
        %s450 = scalar_lea.vmem %s12, %s449
        %v451 = vld [vmem:[%s445] sm:$0xff]
        %v452 = vld [vmem:[%s445 + $0x8] sm:$0xff]
        %v453 = vld [vmem:[%s445 + $0x10] sm:$0x1]
        %v454 = vld [vmem:[%s1] sm:$0x1]
        %v455 = vld [vmem:[%s2] sm:$0x1]
        %vm456 = vcmask 261120
        %v457 = vsel %vm456, %v451, 0.0
        %458 = vadd.xlane.f32.xlu0 %v457
        %v459 = vpop.xlane.xlu0 %458
        %v460 = vsel %vm456, %v452, 0.0
        %461 = vadd.xlane.f32.xlu0 %v460
        %v462 = vpop.xlane.xlu0 %461
        %vm463 = vcmask 253952
        %v464 = vsel %vm463, %v453, 0.0
        %465 = vadd.xlane.f32.xlu0 %v464
        %v466 = vpop.xlane.xlu0 %465
        %v467 = vrcp.pop 32.0
        %v468 = vmul.f32 %v459, %v467
        %v469 = vmul.f32 %v462, %v467
        %v470 = vmul.f32 %v466, %v467
        %v471 = vsub.f32 %v451, %v468
        %v472 = vsub.f32 %v452, %v469
        %v473 = vsub.f32 %v453, %v470
        %v474 = vmul.f32 %v471, %v471
        %v475 = vmul.f32 %v472, %v472
        %v476 = vmul.f32 %v473, %v473
        %v477 = vsel %vm456, %v474, 0.0
        %478 = vadd.xlane.f32.xlu0 %v477
        %v479 = vpop.xlane.xlu0 %478
        %v480 = vsel %vm456, %v475, 0.0
        %481 = vadd.xlane.f32.xlu0 %v480
        %v482 = vpop.xlane.xlu0 %481
        %v483 = vsel %vm463, %v476, 0.0
        %484 = vadd.xlane.f32.xlu0 %v483
        %v485 = vpop.xlane.xlu0 %484
        %v486 = vmul.f32 %v479, %v467
        %v487 = vmul.f32 %v482, %v467
        %v488 = vmul.f32 %v485, %v467
        %v489 = vadd.f32 %v486, 1e-05
        %v490 = vadd.f32 %v487, 1e-05
        %v491 = vadd.f32 %v488, 1e-05
        %v492 = vrsqrt.pop %v489
        %v493 = vrsqrt.pop %v490
        %v494 = vrsqrt.pop %v491
        %v495 = vmul.f32 %v471, %v492
        %v496 = vmul.f32 %v472, %v493
        %v497 = vmul.f32 %v473, %v494
        %v499 = vlaneseq
        %v500 = vshrl.u32 %v499, 7
        %v501 = vsub.s32 0, %v500
        %v502 = vrot.slane %v454, %v501
        %v504 = vmul.f32 %v495, %v502
        %v505 = vmul.f32 %v496, %v502
        %v506 = vmul.f32 %v497, %v502
        %v508 = vlaneseq
        %v509 = vshrl.u32 %v508, 7
        %v510 = vsub.s32 0, %v509
        %v511 = vrot.slane %v455, %v510
        %v513 = vadd.f32 %v504, %v511
        %v514 = vadd.f32 %v505, %v511
        %v515 = vadd.f32 %v506, %v511
        %v516 = vld [vmem:[%s3] sm:$0xff]
        %v517 = vld [vmem:[%s3 + $0x8] sm:$0xff]
        %v518 = vld [vmem:[%s3 + $0x10] sm:$0xff]
        %v519 = vld [vmem:[%s3 + $0x18] sm:$0xff]
        %v521 = vsel %vm456, %v513, 0
        %v524 = vsel %vm456, %v514, 0
        %v527 = vsel %vm456, %v515, 0
        %529 = vmatprep.subr.mxu0 0.0
        %530 = vmatpush1.msra.mxu0 %v516
        %531 = vmatprep.subr.mxu0 0.0
        %532 = vmatpush1.msra.mxu0 %v517
        %533 = vmatprep.subr.mxu0 0.0
        %534 = vmatpush1.msra.mxu0 %v518
        %535 = vmatprep.subr.mxu0 0.0
        %536 = vmatpush1.msra.mxu0 %v519
        %537 = vmatprep.subr.mxu0 0.0
        %538 = vmatpush1.msra.mxu0 0.0
        %539 = vmatprep.subr.mxu0 0.0
        %540 = vmatpush1.msra.mxu0 0.0
        %541 = vmatprep.subr.mxu0 0.0
        %542 = vmatpush1.msra.mxu0 0.0
        %543 = vmatprep.subr.mxu0 0.0
        %544 = vmatpush1.msra.mxu0 0.0
        %545 = vmatprep.subr.mxu0 0.0
        %546 = vmatpush1.msra.mxu0 0.0
        %547 = vmatprep.subr.mxu0 0.0
        %548 = vmatpush1.msra.mxu0 0.0
        %549 = vmatprep.subr.mxu0 0.0
        %550 = vmatpush1.msra.mxu0 0.0
        %551 = vmatprep.subr.mxu0 0.0
        %552 = vmatpush1.msra.mxu0 0.0
        %553 = vmatprep.subr.mxu0 0.0
        %554 = vmatpush1.msra.mxu0 0.0
        %555 = vmatprep.subr.mxu0 0.0
        %556 = vmatpush1.msra.mxu0 0.0
        %557 = vmatprep.subr.mxu0 0.0
        %558 = vmatpush1.msra.mxu0 0.0
        %559 = vmatprep.subr.mxu0 0.0
        %560 = vmatpush1.msra.mxu0 0.0
        %561 = vmatprep.subr.mxu0 0.0
        %562 = vmatpush1.msra.mxu0 0.0
        %563 = vmatprep.subr.mxu0 0.0
        %564 = vmatpush1.msra.mxu0 0.0
        %565 = vmatprep.subr.mxu0 0.0
        %566 = vmatpush1.msra.mxu0 0.0
        %567 = vmatprep.subr.mxu0 0.0
        %568 = vmatpush1.msra.mxu0 0.0
        %569 = vmatprep.subr.mxu0 0.0
        %570 = vmatpush1.msra.mxu0 0.0
        %571 = vmatprep.subr.mxu0 0.0
        %572 = vmatpush1.msra.mxu0 0.0
        %573 = vmatprep.subr.mxu0 0.0
        %574 = vmatpush1.msra.mxu0 0.0
        %575 = vmatprep.subr.mxu0 0.0
        %576 = vmatpush1.msra.mxu0 0.0
        %577 = vmatprep.subr.mxu0 0.0
        %578 = vmatpush1.msra.mxu0 0.0
        %579 = vmatprep.subr.mxu0 0.0
        %580 = vmatpush1.msra.mxu0 0.0
        %581 = vmatprep.subr.mxu0 0.0
        %582 = vmatpush1.msra.mxu0 0.0
        %583 = vmatprep.subr.mxu0 0.0
        %584 = vmatpush1.msra.mxu0 0.0
        %585 = vmatprep.subr.mxu0 0.0
        %586 = vmatpush1.msra.mxu0 0.0
        %587 = vmatprep.subr.mxu0 0.0
        %588 = vmatpush1.msra.mxu0 0.0
        %589 = vmatprep.subr.mxu0 0.0
        %590 = vmatpush1.msra.mxu0 0.0
        %591 = vmatprep.subr.mxu0 0.0
        %592 = vmatpush1.msra.mxu0 0.0
        %593 = vmatprep.mubr.f32.mxu0 0.0
        %594 = vmatmul.mubr.f32.gmra.mrb[0].mxu0 %v521
        %v595 = vpop.f32.mrb[0].mxu0
        %v596 = vadd.f32 0.0, %v595
        %v597 = vpop.f32.mrb[0].mxu0
        %598 = vmatprep.mubr.f32.mxu0 0.0
        %599 = vmatmul.mubr.f32.gmra.mrb[0].mxu0 %v524
        %v600 = vpop.f32.mrb[0].mxu0
        %v601 = vadd.f32 0.0, %v600
        %v602 = vpop.f32.mrb[0].mxu0
        %603 = vmatprep.mubr.f32.mxu0 0.0
        %604 = vmatmul.mubr.f32.gmra.mrb[0].mxu0 %v527
        %v605 = vpop.f32.mrb[0].mxu0
        %v606 = vadd.f32 0.0, %v605
        %v607 = vpop.f32.mrb[0].mxu0
        %608 = vdwg.mxu0
        %vm609 = vcmask 785408
        %610 = vst.msk [vmem:[#allocation2] sm:$0xff] %vm609, %v596
        %611 = vst.msk [vmem:[#allocation2 + $0x8] sm:$0xff] %vm609, %v601
        %vm612 = vcmask 778240
        %613 = vst.msk [vmem:[#allocation2 + $0x10] sm:$0x1] %vm612, %v606
        %v614 = vld [vmem:[#allocation2] sm:$0xff]
        %v615 = vld [vmem:[#allocation2 + $0x8] sm:$0xff]
        %v616 = vld [vmem:[#allocation2 + $0x10] sm:$0x1]
        %620 = vrot.lane.b32.xlu0 %v614, 96
        %v621 = vpop.permute.xlu0 %620
        %622 = vrot.lane.b32.xlu0 %v615, 96
        %v623 = vpop.permute.xlu0 %622
        %624 = vrot.lane.b32.xlu0 %v616, 96
        %v625 = vpop.permute.xlu0 %624
        %v626 = vsel %vm456, %v614, 0
        %v628 = vsel %vm456, %v615, 0
        %v630 = vsel %vm456, %v616, 0
        %v632 = vsel %vm456, %v621, 0
        %v634 = vsel %vm456, %v623, 0
        %v636 = vsel %vm456, %v625, 0
        %638 = vmatprep.subr.mxu0 0.0
        %639 = vmatpush1.xpose.msra.mxu0 %v632
        %640 = vmatprep.subr.mxu0 0.0
        %641 = vmatpush1.xpose.msra.mxu0 %v634
        %642 = vmatprep.subr.mxu0 0.0
        %643 = vmatpush1.xpose.msra.mxu0 %v636
        %644 = vmatprep.subr.mxu0 0.0
        %645 = vmatpush1.xpose.msra.mxu0 0.0
        %646 = vmatprep.subr.mxu0 0.0
        %647 = vmatpush1.xpose.msra.mxu0 0.0
        %648 = vmatprep.subr.mxu0 0.0
        %649 = vmatpush1.xpose.msra.mxu0 0.0
        %650 = vmatprep.subr.mxu0 0.0
        %651 = vmatpush1.xpose.msra.mxu0 0.0
        %652 = vmatprep.subr.mxu0 0.0
        %653 = vmatpush1.xpose.msra.mxu0 0.0
        %654 = vmatprep.subr.mxu0 0.0
        %655 = vmatpush1.xpose.msra.mxu0 0.0
        %656 = vmatprep.subr.mxu0 0.0
        %657 = vmatpush1.xpose.msra.mxu0 0.0
        %658 = vmatprep.subr.mxu0 0.0
        %659 = vmatpush1.xpose.msra.mxu0 0.0
        %660 = vmatprep.subr.mxu0 0.0
        %661 = vmatpush1.xpose.msra.mxu0 0.0
        %662 = vmatprep.subr.mxu0 0.0
        %663 = vmatpush1.xpose.msra.mxu0 0.0
        %664 = vmatprep.subr.mxu0 0.0
        %665 = vmatpush1.xpose.msra.mxu0 0.0
        %666 = vmatprep.subr.mxu0 0.0
        %667 = vmatpush1.xpose.msra.mxu0 0.0
        %668 = vmatprep.subr.mxu0 0.0
        %669 = vmatpush1.xpose.msra.mxu0 0.0
        %670 = vmatprep.subr.mxu0 0.0
        %671 = vmatpush1.xpose.msra.mxu0 0.0
        %672 = vmatprep.subr.mxu0 0.0
        %673 = vmatpush1.xpose.msra.mxu0 0.0
        %674 = vmatprep.subr.mxu0 0.0
        %675 = vmatpush1.xpose.msra.mxu0 0.0
        %676 = vmatprep.subr.mxu0 0.0
        %677 = vmatpush1.xpose.msra.mxu0 0.0
        %678 = vmatprep.subr.mxu0 0.0
        %679 = vmatpush1.xpose.msra.mxu0 0.0
        %680 = vmatprep.subr.mxu0 0.0
        %681 = vmatpush1.xpose.msra.mxu0 0.0
        %682 = vmatprep.subr.mxu0 0.0
        %683 = vmatpush1.xpose.msra.mxu0 0.0
        %684 = vmatprep.subr.mxu0 0.0
        %685 = vmatpush1.xpose.msra.mxu0 0.0
        %686 = vmatprep.subr.mxu0 0.0
        %687 = vmatpush1.xpose.msra.mxu0 0.0
        %688 = vmatprep.subr.mxu0 0.0
        %689 = vmatpush1.xpose.msra.mxu0 0.0
        %690 = vmatprep.subr.mxu0 0.0
        %691 = vmatpush1.xpose.msra.mxu0 0.0
        %692 = vmatprep.subr.mxu0 0.0
        %693 = vmatpush1.xpose.msra.mxu0 0.0
        %694 = vmatprep.subr.mxu0 0.0
        %695 = vmatpush1.xpose.msra.mxu0 0.0
        %696 = vmatprep.subr.mxu0 0.0
        %697 = vmatpush1.xpose.msra.mxu0 0.0
        %698 = vmatprep.subr.mxu0 0.0
        %699 = vmatpush1.xpose.msra.mxu0 0.0
        %700 = vmatprep.subr.mxu0 0.0
        %701 = vmatpush1.xpose.msra.mxu0 0.0
        %702 = vmatprep.mubr.f32.mxu0 0.0
        %703 = vmatmul.mubr.f32.gmra.mrb[0].mxu0 %v626
        %v704 = vpop.f32.mrb[0].mxu0
        %v705 = vadd.f32 0.0, %v704
        %v706 = vpop.f32.mrb[0].mxu0
        %707 = vmatprep.mubr.f32.mxu0 0.0
        %708 = vmatmul.mubr.f32.gmra.mrb[0].mxu0 %v628
        %v709 = vpop.f32.mrb[0].mxu0
        %v710 = vadd.f32 0.0, %v709
        %v711 = vpop.f32.mrb[0].mxu0
        %712 = vmatprep.mubr.f32.mxu0 0.0
        %713 = vmatmul.mubr.f32.gmra.mrb[0].mxu0 %v630
        %v714 = vpop.f32.mrb[0].mxu0
        %v715 = vadd.f32 0.0, %v714
        %v716 = vpop.f32.mrb[0].mxu0
        %717 = vdwg.mxu0
        %v718 = vmul.f32 %v705, 0.17677669
        %v719 = vmul.f32 %v710, 0.17677669
        %v720 = vmul.f32 %v715, 0.17677669
        %vm721 = vcmask 138240
        %v722 = vsel %vm721, %v718, -inf
        %723 = vmax.xlane.f32.xlu0 %v722
        %v724 = vpop.xlane.xlu0 %723
        %v725 = vsel %vm721, %v719, -inf
        %726 = vmax.xlane.f32.xlu0 %v725
        %v727 = vpop.xlane.xlu0 %726
        %vm728 = vcmask 131072
        %v729 = vsel %vm728, %v720, -inf
        %730 = vmax.xlane.f32.xlu0 %v729
        %v731 = vpop.xlane.xlu0 %730
        %v732 = vsub.f32 %v718, %v724
        %v733 = vsub.f32 %v719, %v727
        %v734 = vsub.f32 %v720, %v731
        %v735 = vmul.f32 %v732, 1.442695
        %v736 = vpow.pop %v735
        %v737 = vmul.f32 %v733, 1.442695
        %v738 = vpow.pop %v737
        %v739 = vmul.f32 %v734, 1.442695
        %v740 = vpow.pop %v739
        %v741 = vsel %vm721, %v736, 0.0
        %742 = vadd.xlane.f32.xlu0 %v741
        %v743 = vpop.xlane.xlu0 %742
        %v744 = vsel %vm721, %v738, 0.0
        %745 = vadd.xlane.f32.xlu0 %v744
        %v746 = vpop.xlane.xlu0 %745
        %v747 = vsel %vm728, %v740, 0.0
        %748 = vadd.xlane.f32.xlu0 %v747
        %v749 = vpop.xlane.xlu0 %748
        %v750 = vrcp.pop %v743
        %v751 = vrcp.pop %v746
        %v752 = vrcp.pop %v749
        %v753 = vmul.f32 %v736, %v750
        %v754 = vmul.f32 %v738, %v751
        %v755 = vmul.f32 %v740, %v752
        %756 = vst.msk [vmem:[%s440] sm:$0x1] %vm728, %v753
        %757 = vrot.lane.b32.xlu0 %v614, 64
        %v758 = vpop.permute.xlu0 %757
        %759 = vrot.lane.b32.xlu0 %v615, 64
        %v760 = vpop.permute.xlu0 %759
        %761 = vrot.lane.b32.xlu0 %v616, 64
        %v762 = vpop.permute.xlu0 %761
        %v766 = vsel %vm721, %v753, 0
        %v769 = vsel %vm721, %v754, 0
        %v772 = vsel %vm721, %v755, 0
        %vm774 = vcmask 1040384
        %v775 = vsel %vm774, %v762, 0
        %777 = vmatprep.subr.mxu0 0.0
        %778 = vmatpush1.msra.mxu0 %v758
        %779 = vmatprep.subr.mxu0 0.0
        %780 = vmatpush1.msra.mxu0 %v760
        %781 = vmatprep.subr.mxu0 0.0
        %782 = vmatpush1.msra.mxu0 %v775
        %783 = vmatprep.subr.mxu0 0.0
        %784 = vmatpush1.msra.mxu0 0.0
        %785 = vmatprep.subr.mxu0 0.0
        %786 = vmatpush1.msra.mxu0 0.0
        %787 = vmatprep.subr.mxu0 0.0
        %788 = vmatpush1.msra.mxu0 0.0
        %789 = vmatprep.subr.mxu0 0.0
        %790 = vmatpush1.msra.mxu0 0.0
        %791 = vmatprep.subr.mxu0 0.0
        %792 = vmatpush1.msra.mxu0 0.0
        %793 = vmatprep.subr.mxu0 0.0
        %794 = vmatpush1.msra.mxu0 0.0
        %795 = vmatprep.subr.mxu0 0.0
        %796 = vmatpush1.msra.mxu0 0.0
        %797 = vmatprep.subr.mxu0 0.0
        %798 = vmatpush1.msra.mxu0 0.0
        %799 = vmatprep.subr.mxu0 0.0
        %800 = vmatpush1.msra.mxu0 0.0
        %801 = vmatprep.subr.mxu0 0.0
        %802 = vmatpush1.msra.mxu0 0.0
        %803 = vmatprep.subr.mxu0 0.0
        %804 = vmatpush1.msra.mxu0 0.0
        %805 = vmatprep.subr.mxu0 0.0
        %806 = vmatpush1.msra.mxu0 0.0
        %807 = vmatprep.subr.mxu0 0.0
        %808 = vmatpush1.msra.mxu0 0.0
        %809 = vmatprep.subr.mxu0 0.0
        %810 = vmatpush1.msra.mxu0 0.0
        %811 = vmatprep.subr.mxu0 0.0
        %812 = vmatpush1.msra.mxu0 0.0
        %813 = vmatprep.subr.mxu0 0.0
        %814 = vmatpush1.msra.mxu0 0.0
        %815 = vmatprep.subr.mxu0 0.0
        %816 = vmatpush1.msra.mxu0 0.0
        %817 = vmatprep.subr.mxu0 0.0
        %818 = vmatpush1.msra.mxu0 0.0
        %819 = vmatprep.subr.mxu0 0.0
        %820 = vmatpush1.msra.mxu0 0.0
        %821 = vmatprep.subr.mxu0 0.0
        %822 = vmatpush1.msra.mxu0 0.0
        %823 = vmatprep.subr.mxu0 0.0
        %824 = vmatpush1.msra.mxu0 0.0
        %825 = vmatprep.subr.mxu0 0.0
        %826 = vmatpush1.msra.mxu0 0.0
        %827 = vmatprep.subr.mxu0 0.0
        %828 = vmatpush1.msra.mxu0 0.0
        %829 = vmatprep.subr.mxu0 0.0
        %830 = vmatpush1.msra.mxu0 0.0
        %831 = vmatprep.subr.mxu0 0.0
        %832 = vmatpush1.msra.mxu0 0.0
        %833 = vmatprep.subr.mxu0 0.0
        %834 = vmatpush1.msra.mxu0 0.0
        %835 = vmatprep.subr.mxu0 0.0
        %836 = vmatpush1.msra.mxu0 0.0
        %837 = vmatprep.subr.mxu0 0.0
        %838 = vmatpush1.msra.mxu0 0.0
        %839 = vmatprep.subr.mxu0 0.0
        %840 = vmatpush1.msra.mxu0 0.0
        %841 = vmatprep.mubr.f32.mxu0 0.0
        %842 = vmatmul.mubr.f32.gmra.mrb[0].mxu0 %v766
        %v843 = vpop.f32.mrb[0].mxu0
        %v844 = vadd.f32 0.0, %v843
        %v845 = vpop.f32.mrb[0].mxu0
        %846 = vmatprep.mubr.f32.mxu0 0.0
        %847 = vmatmul.mubr.f32.gmra.mrb[0].mxu0 %v769
        %v848 = vpop.f32.mrb[0].mxu0
        %v849 = vadd.f32 0.0, %v848
        %v850 = vpop.f32.mrb[0].mxu0
        %851 = vmatprep.mubr.f32.mxu0 0.0
        %852 = vmatmul.mubr.f32.gmra.mrb[0].mxu0 %v772
        %v853 = vpop.f32.mrb[0].mxu0
        %v854 = vadd.f32 0.0, %v853
        %v855 = vpop.f32.mrb[0].mxu0
        %856 = vdwg.mxu0
        %857 = vxpose.xlu0.b32.start [1/16] %v844, 128
        %858 = vxpose.xlu0.b32.cont [2/16] %v849, 128
        %859 = vxpose.xlu0.b32.cont [3/16] %v854, 128
        %860 = vxpose.xlu0.b32.cont [4/16] 0.0, 128
        %861 = vxpose.xlu0.b32.cont [5/16] 0.0, 128
        %862 = vxpose.xlu0.b32.cont [6/16] 0.0, 128
        %863 = vxpose.xlu0.b32.cont [7/16] 0.0, 128
        %864 = vxpose.xlu0.b32.cont [8/16] 0.0, 128
        %865 = vxpose.xlu0.b32.cont [9/16] 0.0, 128
        %866 = vxpose.xlu0.b32.cont [10/16] 0.0, 128
        %867 = vxpose.xlu0.b32.cont [11/16] 0.0, 128
        %868 = vxpose.xlu0.b32.cont [12/16] 0.0, 128
        %869 = vxpose.xlu0.b32.cont [13/16] 0.0, 128
        %870 = vxpose.xlu0.b32.cont [14/16] 0.0, 128
        %871 = vxpose.xlu0.b32.cont [15/16] 0.0, 128
        %872 = vxpose.xlu0.b32.end [16/16] 0.0, 128
        %v873 = vpop.trf.xlu0
        %v874 = vpop.trf.xlu0
        %v875 = vpop.trf.xlu0
        %v876 = vpop.trf.xlu0
        %v877 = vpop.trf.xlu0
        %v878 = vpop.trf.xlu0
        %v879 = vpop.trf.xlu0
        %v880 = vpop.trf.xlu0
        %v881 = vpop.trf.xlu0
        %v882 = vpop.trf.xlu0
        %v883 = vpop.trf.xlu0
        %v884 = vpop.trf.xlu0
        %v885 = vpop.trf.xlu0
        %v886 = vpop.trf.xlu0
        %v887 = vpop.trf.xlu0
        %v888 = vpop.trf.xlu0
        %889 = vst.msk [vmem:[#allocation3] sm:$0xff] %vm721, %v873
        %890 = vst.msk [vmem:[#allocation3 + $0x8] sm:$0xff] %vm721, %v874
        %891 = vst.msk [vmem:[#allocation3 + $0x10] sm:$0xff] %vm721, %v875
        %892 = vst.msk [vmem:[#allocation3 + $0x18] sm:$0xff] %vm721, %v876
        %v893 = vld [vmem:[#allocation3] sm:$0x1]
        %894 = vst.msk [vmem:[#allocation4] sm:$0x1] %vm728, %v893
        %v895 = vld [vmem:[#allocation3 + $0x1] sm:$0x1]
        %897 = vrot.lane.b32.xlu0 %v895, 17
        %v898 = vpop.permute.xlu0 %897
        %vm900 = vcmask 254088
        %901 = vst.msk [vmem:[#allocation4] sm:$0x1] %vm900, %v898
        %v902 = vld [vmem:[#allocation3 + $0x1] sm:$0x1]
        %904 = vrot.lane.b32.xlu0 %v902, 113
        %v905 = vpop.permute.xlu0 %904
        %vm907 = vcmask 8192
        %908 = vst.msk [vmem:[#allocation4 + $0x1] sm:$0x1] %vm907, %v905
        %v909 = vld [vmem:[#allocation3 + $0x2] sm:$0x1]
        %911 = vrot.lane.b32.xlu0 %v909, 2
        %v912 = vpop.permute.xlu0 %911
        %vm914 = vcmask 147472
        %915 = vst.msk [vmem:[#allocation4 + $0x1] sm:$0x1] %vm914, %v912
        %v916 = vld [vmem:[#allocation3 + $0x3] sm:$0x1]
        %918 = vrot.lane.b32.xlu0 %v916, 19
        %v919 = vpop.permute.xlu0 %918
        %vm921 = vcmask 254104
        %922 = vst.msk [vmem:[#allocation4 + $0x1] sm:$0x1] %vm921, %v919
        %v923 = vld [vmem:[#allocation3 + $0x3] sm:$0x1]
        %925 = vrot.lane.b32.xlu0 %v923, 115
        %v926 = vpop.permute.xlu0 %925
        %vm928 = vcmask 24576
        %929 = vst.msk [vmem:[#allocation4 + $0x2] sm:$0x1] %vm928, %v926
        %v930 = vld [vmem:[#allocation3 + $0x4] sm:$0x1]
        %932 = vrot.lane.b32.xlu0 %v930, 4
        %v933 = vpop.permute.xlu0 %932
        %vm935 = vcmask 163872
        %936 = vst.msk [vmem:[#allocation4 + $0x2] sm:$0x1] %vm935, %v933
        %v937 = vld [vmem:[#allocation3 + $0x5] sm:$0x1]
        %939 = vrot.lane.b32.xlu0 %v937, 21
        %v940 = vpop.permute.xlu0 %939
        %vm942 = vcmask 254120
        %943 = vst.msk [vmem:[#allocation4 + $0x2] sm:$0x1] %vm942, %v940
        %v944 = vld [vmem:[#allocation3 + $0x5] sm:$0x1]
        %946 = vrot.lane.b32.xlu0 %v944, 117
        %v947 = vpop.permute.xlu0 %946
        %vm949 = vcmask 40960
        %950 = vst.msk [vmem:[#allocation4 + $0x3] sm:$0x1] %vm949, %v947
        %v951 = vld [vmem:[#allocation3 + $0x6] sm:$0x1]
        %953 = vrot.lane.b32.xlu0 %v951, 6
        %v954 = vpop.permute.xlu0 %953
        %vm956 = vcmask 180272
        %957 = vst.msk [vmem:[#allocation4 + $0x3] sm:$0x1] %vm956, %v954
        %v958 = vld [vmem:[#allocation3 + $0x7] sm:$0x1]
        %960 = vrot.lane.b32.xlu0 %v958, 23
        %v961 = vpop.permute.xlu0 %960
        %vm963 = vcmask 254136
        %964 = vst.msk [vmem:[#allocation4 + $0x3] sm:$0x1] %vm963, %v961
        %v965 = vld [vmem:[#allocation3 + $0x7] sm:$0x1]
        %967 = vrot.lane.b32.xlu0 %v965, 119
        %v968 = vpop.permute.xlu0 %967
        %vm970 = vcmask 57344
        %971 = vst.msk [vmem:[#allocation4 + $0x4] sm:$0x1] %vm970, %v968
        %v972 = vld [vmem:[#allocation3 + $0x8] sm:$0x1]
        %974 = vrot.lane.b32.xlu0 %v972, 8
        %v975 = vpop.permute.xlu0 %974
        %vm977 = vcmask 196672
        %978 = vst.msk [vmem:[#allocation4 + $0x4] sm:$0x1] %vm977, %v975
        %v979 = vld [vmem:[#allocation3 + $0x9] sm:$0x1]
        %981 = vrot.lane.b32.xlu0 %v979, 25
        %v982 = vpop.permute.xlu0 %981
        %vm984 = vcmask 254152
        %985 = vst.msk [vmem:[#allocation4 + $0x4] sm:$0x1] %vm984, %v982
        %v986 = vld [vmem:[#allocation3 + $0x9] sm:$0x1]
        %988 = vrot.lane.b32.xlu0 %v986, 121
        %v989 = vpop.permute.xlu0 %988
        %vm991 = vcmask 73728
        %992 = vst.msk [vmem:[#allocation4 + $0x5] sm:$0x1] %vm991, %v989
        %v993 = vld [vmem:[#allocation3 + $0xa] sm:$0x1]
        %995 = vrot.lane.b32.xlu0 %v993, 10
        %v996 = vpop.permute.xlu0 %995
        %vm998 = vcmask 213072
        %999 = vst.msk [vmem:[#allocation4 + $0x5] sm:$0x1] %vm998, %v996
        %v1000 = vld [vmem:[#allocation3 + $0xb] sm:$0x1]
        %1002 = vrot.lane.b32.xlu0 %v1000, 27
        %v1003 = vpop.permute.xlu0 %1002
        %vm1005 = vcmask 254168
        %1006 = vst.msk [vmem:[#allocation4 + $0x5] sm:$0x1] %vm1005, %v1003
        %v1007 = vld [vmem:[#allocation3 + $0xb] sm:$0x1]
        %1009 = vrot.lane.b32.xlu0 %v1007, 123
        %v1010 = vpop.permute.xlu0 %1009
        %vm1012 = vcmask 90112
        %1013 = vst.msk [vmem:[#allocation4 + $0x6] sm:$0x1] %vm1012, %v1010
        %v1014 = vld [vmem:[#allocation3 + $0xc] sm:$0x1]
        %1016 = vrot.lane.b32.xlu0 %v1014, 12
        %v1017 = vpop.permute.xlu0 %1016
        %vm1019 = vcmask 229472
        %1020 = vst.msk [vmem:[#allocation4 + $0x6] sm:$0x1] %vm1019, %v1017
        %v1021 = vld [vmem:[#allocation3 + $0xd] sm:$0x1]
        %1023 = vrot.lane.b32.xlu0 %v1021, 29
        %v1024 = vpop.permute.xlu0 %1023
        %vm1026 = vcmask 254184
        %1027 = vst.msk [vmem:[#allocation4 + $0x6] sm:$0x1] %vm1026, %v1024
        %v1028 = vld [vmem:[#allocation3 + $0xd] sm:$0x1]
        %1030 = vrot.lane.b32.xlu0 %v1028, 125
        %v1031 = vpop.permute.xlu0 %1030
        %vm1033 = vcmask 106496
        %1034 = vst.msk [vmem:[#allocation4 + $0x7] sm:$0x1] %vm1033, %v1031
        %v1035 = vld [vmem:[#allocation3 + $0xe] sm:$0x1]
        %1037 = vrot.lane.b32.xlu0 %v1035, 14
        %v1038 = vpop.permute.xlu0 %1037
        %vm1040 = vcmask 245872
        %1041 = vst.msk [vmem:[#allocation4 + $0x7] sm:$0x1] %vm1040, %v1038
        %v1042 = vld [vmem:[#allocation3 + $0xf] sm:$0x1]
        %1044 = vrot.lane.b32.xlu0 %v1042, 31
        %v1045 = vpop.permute.xlu0 %1044
        %vm1047 = vcmask 254200
        %1048 = vst.msk [vmem:[#allocation4 + $0x7] sm:$0x1] %vm1047, %v1045
        %v1049 = vld [vmem:[#allocation3 + $0xf] sm:$0x1]
        %1051 = vrot.lane.b32.xlu0 %v1049, 127
        %v1052 = vpop.permute.xlu0 %1051
        %vm1054 = vcmask 122880
        %1055 = vst.msk [vmem:[#allocation4 + $0x8] sm:$0x1] %vm1054, %v1052
        %v1056 = vld [vmem:[#allocation3 + $0x10] sm:$0x1]
        %1058 = vrot.lane.b32.xlu0 %v1056, 16
        %v1059 = vpop.permute.xlu0 %1058
        %vm1061 = vcmask 254080
        %1062 = vst.msk [vmem:[#allocation4 + $0x8] sm:$0x1] %vm1061, %v1059
        %v1063 = vld [vmem:[#allocation3 + $0x10] sm:$0x1]
        %1065 = vrot.lane.b32.xlu0 %v1063, 112
        %v1066 = vpop.permute.xlu0 %1065
        %vm1068 = vcmask 0
        %1069 = vst.msk [vmem:[#allocation4 + $0x9] sm:$0x1] %vm1068, %v1066
        %v1070 = vld [vmem:[#allocation3 + $0x11] sm:$0x1]
        %1072 = vrot.lane.b32.xlu0 %v1070, 1
        %v1073 = vpop.permute.xlu0 %1072
        %vm1075 = vcmask 139272
        %1076 = vst.msk [vmem:[#allocation4 + $0x9] sm:$0x1] %vm1075, %v1073
        %v1077 = vld [vmem:[#allocation3 + $0x12] sm:$0x1]
        %1079 = vrot.lane.b32.xlu0 %v1077, 18
        %v1080 = vpop.permute.xlu0 %1079
        %vm1082 = vcmask 254096
        %1083 = vst.msk [vmem:[#allocation4 + $0x9] sm:$0x1] %vm1082, %v1080
        %v1084 = vld [vmem:[#allocation3 + $0x12] sm:$0x1]
        %1086 = vrot.lane.b32.xlu0 %v1084, 114
        %v1087 = vpop.permute.xlu0 %1086
        %vm1089 = vcmask 16384
        %1090 = vst.msk [vmem:[#allocation4 + $0xa] sm:$0x1] %vm1089, %v1087
        %v1091 = vld [vmem:[#allocation3 + $0x13] sm:$0x1]
        %1093 = vrot.lane.b32.xlu0 %v1091, 3
        %v1094 = vpop.permute.xlu0 %1093
        %vm1096 = vcmask 155672
        %1097 = vst.msk [vmem:[#allocation4 + $0xa] sm:$0x1] %vm1096, %v1094
        %v1098 = vld [vmem:[#allocation3 + $0x14] sm:$0x1]
        %1100 = vrot.lane.b32.xlu0 %v1098, 20
        %v1101 = vpop.permute.xlu0 %1100
        %vm1103 = vcmask 254112
        %1104 = vst.msk [vmem:[#allocation4 + $0xa] sm:$0x1] %vm1103, %v1101
        %v1105 = vld [vmem:[#allocation3 + $0x14] sm:$0x1]
        %1107 = vrot.lane.b32.xlu0 %v1105, 116
        %v1108 = vpop.permute.xlu0 %1107
        %vm1110 = vcmask 32768
        %1111 = vst.msk [vmem:[#allocation4 + $0xb] sm:$0x1] %vm1110, %v1108
        %v1112 = vld [vmem:[#allocation3 + $0x15] sm:$0x1]
        %1114 = vrot.lane.b32.xlu0 %v1112, 5
        %v1115 = vpop.permute.xlu0 %1114
        %vm1117 = vcmask 172072
        %1118 = vst.msk [vmem:[#allocation4 + $0xb] sm:$0x1] %vm1117, %v1115
        %v1119 = vld [vmem:[#allocation3 + $0x16] sm:$0x1]
        %1121 = vrot.lane.b32.xlu0 %v1119, 22
        %v1122 = vpop.permute.xlu0 %1121
        %vm1124 = vcmask 254128
        %1125 = vst.msk [vmem:[#allocation4 + $0xb] sm:$0x1] %vm1124, %v1122
        %v1126 = vld [vmem:[#allocation3 + $0x16] sm:$0x1]
        %1128 = vrot.lane.b32.xlu0 %v1126, 118
        %v1129 = vpop.permute.xlu0 %1128
        %vm1131 = vcmask 49152
        %1132 = vst.msk [vmem:[#allocation4 + $0xc] sm:$0x1] %vm1131, %v1129
        %v1133 = vld [vmem:[#allocation3 + $0x17] sm:$0x1]
        %1135 = vrot.lane.b32.xlu0 %v1133, 7
        %v1136 = vpop.permute.xlu0 %1135
        %vm1138 = vcmask 188472
        %1139 = vst.msk [vmem:[#allocation4 + $0xc] sm:$0x1] %vm1138, %v1136
        %v1140 = vld [vmem:[#allocation3 + $0x18] sm:$0x1]
        %1142 = vrot.lane.b32.xlu0 %v1140, 24
        %v1143 = vpop.permute.xlu0 %1142
        %vm1145 = vcmask 254144
        %1146 = vst.msk [vmem:[#allocation4 + $0xc] sm:$0x1] %vm1145, %v1143
        %v1147 = vld [vmem:[#allocation3 + $0x18] sm:$0x1]
        %1149 = vrot.lane.b32.xlu0 %v1147, 120
        %v1150 = vpop.permute.xlu0 %1149
        %vm1152 = vcmask 65536
        %1153 = vst.msk [vmem:[#allocation4 + $0xd] sm:$0x1] %vm1152, %v1150
        %v1154 = vld [vmem:[#allocation3 + $0x19] sm:$0x1]
        %1156 = vrot.lane.b32.xlu0 %v1154, 9
        %v1157 = vpop.permute.xlu0 %1156
        %vm1159 = vcmask 204872
        %1160 = vst.msk [vmem:[#allocation4 + $0xd] sm:$0x1] %vm1159, %v1157
        %v1161 = vld [vmem:[#allocation3 + $0x1a] sm:$0x1]
        %1163 = vrot.lane.b32.xlu0 %v1161, 26
        %v1164 = vpop.permute.xlu0 %1163
        %vm1166 = vcmask 254160
        %1167 = vst.msk [vmem:[#allocation4 + $0xd] sm:$0x1] %vm1166, %v1164
        %v1168 = vld [vmem:[#allocation3 + $0x1a] sm:$0x1]
        %1170 = vrot.lane.b32.xlu0 %v1168, 122
        %v1171 = vpop.permute.xlu0 %1170
        %vm1173 = vcmask 81920
        %1174 = vst.msk [vmem:[#allocation4 + $0xe] sm:$0x1] %vm1173, %v1171
        %v1175 = vld [vmem:[#allocation3 + $0x1b] sm:$0x1]
        %1177 = vrot.lane.b32.xlu0 %v1175, 11
        %v1178 = vpop.permute.xlu0 %1177
        %vm1180 = vcmask 221272
        %1181 = vst.msk [vmem:[#allocation4 + $0xe] sm:$0x1] %vm1180, %v1178
        %v1182 = vld [vmem:[#allocation3 + $0x1c] sm:$0x1]
        %1184 = vrot.lane.b32.xlu0 %v1182, 28
        %v1185 = vpop.permute.xlu0 %1184
        %vm1187 = vcmask 254176
        %1188 = vst.msk [vmem:[#allocation4 + $0xe] sm:$0x1] %vm1187, %v1185
        %v1189 = vld [vmem:[#allocation3 + $0x1c] sm:$0x1]
        %1191 = vrot.lane.b32.xlu0 %v1189, 124
        %v1192 = vpop.permute.xlu0 %1191
        %vm1194 = vcmask 98304
        %1195 = vst.msk [vmem:[#allocation4 + $0xf] sm:$0x1] %vm1194, %v1192
        %v1196 = vld [vmem:[#allocation3 + $0x1d] sm:$0x1]
        %1198 = vrot.lane.b32.xlu0 %v1196, 13
        %v1199 = vpop.permute.xlu0 %1198
        %vm1201 = vcmask 237672
        %1202 = vst.msk [vmem:[#allocation4 + $0xf] sm:$0x1] %vm1201, %v1199
        %v1203 = vld [vmem:[#allocation3 + $0x1e] sm:$0x1]
        %1205 = vrot.lane.b32.xlu0 %v1203, 30
        %v1206 = vpop.permute.xlu0 %1205
        %vm1208 = vcmask 254192
        %1209 = vst.msk [vmem:[#allocation4 + $0xf] sm:$0x1] %vm1208, %v1206
        %v1210 = vld [vmem:[#allocation3 + $0x1e] sm:$0x1]
        %1212 = vrot.lane.b32.xlu0 %v1210, 126
        %v1213 = vpop.permute.xlu0 %1212
        %vm1215 = vcmask 114688
        %1216 = vst.msk [vmem:[#allocation4 + $0x10] sm:$0x1] %vm1215, %v1213
        %v1217 = vld [vmem:[#allocation3 + $0x1f] sm:$0x1]
        %1219 = vrot.lane.b32.xlu0 %v1217, 15
        %v1220 = vpop.permute.xlu0 %1219
        %vm1222 = vcmask 254072
        %1223 = vst.msk [vmem:[#allocation4 + $0x10] sm:$0x1] %vm1222, %v1220
        %v1224 = vld [vmem:[#allocation4] sm:$0xff]
        %v1225 = vld [vmem:[#allocation4 + $0x8] sm:$0xff]
        %v1226 = vld [vmem:[#allocation4 + $0x10] sm:$0x1]
        %v1227 = vld [vmem:[%s4] sm:$0xff]
        %v1228 = vld [vmem:[%s4 + $0x8] sm:$0xff]
        %v1229 = vld [vmem:[%s4 + $0x10] sm:$0xff]
        %v1230 = vld [vmem:[%s4 + $0x18] sm:$0xff]
        %v1231 = vld [vmem:[%s5] sm:$0x1]
        %v1233 = vlaneseq
        %v1234 = vshrl.u32 %v1233, 7
        %v1235 = vsub.s32 0, %v1234
        %v1236 = vrot.slane %v1231, %v1235
        %v1239 = vsel %vm456, %v1224, 0
        %v1242 = vsel %vm456, %v1225, 0
        %v1245 = vsel %vm456, %v1226, 0
        %1247 = vmatprep.subr.mxu0 0.0
        %1248 = vmatpush1.msra.mxu0 %v1227
        %1249 = vmatprep.subr.mxu0 0.0
        %1250 = vmatpush1.msra.mxu0 %v1228
        %1251 = vmatprep.subr.mxu0 0.0
        %1252 = vmatpush1.msra.mxu0 %v1229
        %1253 = vmatprep.subr.mxu0 0.0
        %1254 = vmatpush1.msra.mxu0 %v1230
        %1255 = vmatprep.subr.mxu0 0.0
        %1256 = vmatpush1.msra.mxu0 0.0
        %1257 = vmatprep.subr.mxu0 0.0
        %1258 = vmatpush1.msra.mxu0 0.0
        %1259 = vmatprep.subr.mxu0 0.0
        %1260 = vmatpush1.msra.mxu0 0.0
        %1261 = vmatprep.subr.mxu0 0.0
        %1262 = vmatpush1.msra.mxu0 0.0
        %1263 = vmatprep.subr.mxu0 0.0
        %1264 = vmatpush1.msra.mxu0 0.0
        %1265 = vmatprep.subr.mxu0 0.0
        %1266 = vmatpush1.msra.mxu0 0.0
        %1267 = vmatprep.subr.mxu0 0.0
        %1268 = vmatpush1.msra.mxu0 0.0
        %1269 = vmatprep.subr.mxu0 0.0
        %1270 = vmatpush1.msra.mxu0 0.0
        %1271 = vmatprep.subr.mxu0 0.0
        %1272 = vmatpush1.msra.mxu0 0.0
        %1273 = vmatprep.subr.mxu0 0.0
        %1274 = vmatpush1.msra.mxu0 0.0
        %1275 = vmatprep.subr.mxu0 0.0
        %1276 = vmatpush1.msra.mxu0 0.0
        %1277 = vmatprep.subr.mxu0 0.0
        %1278 = vmatpush1.msra.mxu0 0.0
        %1279 = vmatprep.subr.mxu0 0.0
        %1280 = vmatpush1.msra.mxu0 0.0
        %1281 = vmatprep.subr.mxu0 0.0
        %1282 = vmatpush1.msra.mxu0 0.0
        %1283 = vmatprep.subr.mxu0 0.0
        %1284 = vmatpush1.msra.mxu0 0.0
        %1285 = vmatprep.subr.mxu0 0.0
        %1286 = vmatpush1.msra.mxu0 0.0
        %1287 = vmatprep.subr.mxu0 0.0
        %1288 = vmatpush1.msra.mxu0 0.0
        %1289 = vmatprep.subr.mxu0 0.0
        %1290 = vmatpush1.msra.mxu0 0.0
        %1291 = vmatprep.subr.mxu0 0.0
        %1292 = vmatpush1.msra.mxu0 0.0
        %1293 = vmatprep.subr.mxu0 0.0
        %1294 = vmatpush1.msra.mxu0 0.0
        %1295 = vmatprep.subr.mxu0 0.0
        %1296 = vmatpush1.msra.mxu0 0.0
        %1297 = vmatprep.subr.mxu0 0.0
        %1298 = vmatpush1.msra.mxu0 0.0
        %1299 = vmatprep.subr.mxu0 0.0
        %1300 = vmatpush1.msra.mxu0 0.0
        %1301 = vmatprep.subr.mxu0 0.0
        %1302 = vmatpush1.msra.mxu0 0.0
        %1303 = vmatprep.subr.mxu0 0.0
        %1304 = vmatpush1.msra.mxu0 0.0
        %1305 = vmatprep.subr.mxu0 0.0
        %1306 = vmatpush1.msra.mxu0 0.0
        %1307 = vmatprep.subr.mxu0 0.0
        %1308 = vmatpush1.msra.mxu0 0.0
        %1309 = vmatprep.subr.mxu0 0.0
        %1310 = vmatpush1.msra.mxu0 0.0
        %1311 = vmatprep.mubr.f32.mxu0 0.0
        %1312 = vmatmul.mubr.f32.gmra.mrb[0].mxu0 %v1239
        %v1313 = vpop.f32.mrb[0].mxu0
        %v1314 = vadd.f32 %v1236, %v1313
        %v1315 = vpop.f32.mrb[0].mxu0
        %1316 = vmatprep.mubr.f32.mxu0 0.0
        %1317 = vmatmul.mubr.f32.gmra.mrb[0].mxu0 %v1242
        %v1318 = vpop.f32.mrb[0].mxu0
        %v1319 = vadd.f32 %v1236, %v1318
        %v1320 = vpop.f32.mrb[0].mxu0
        %1321 = vmatprep.mubr.f32.mxu0 0.0
        %1322 = vmatmul.mubr.f32.gmra.mrb[0].mxu0 %v1245
        %v1323 = vpop.f32.mrb[0].mxu0
        %v1324 = vadd.f32 %v1236, %v1323
        %v1325 = vpop.f32.mrb[0].mxu0
        %1326 = vdwg.mxu0
        %v1327 = vmul.f32 %v1314, 2.0
        %v1328 = vmul.f32 %v1319, 2.0
        %v1329 = vmul.f32 %v1324, 2.0
        %v1330 = vld [vmem:[%s6] sm:$0x1]
        %v1331 = vld [vmem:[%s7] sm:$0x1]
        %v1332 = vsel %vm456, %v1327, 0.0
        %1333 = vadd.xlane.f32.xlu0 %v1332
        %v1334 = vpop.xlane.xlu0 %1333
        %v1335 = vsel %vm456, %v1328, 0.0
        %1336 = vadd.xlane.f32.xlu0 %v1335
        %v1337 = vpop.xlane.xlu0 %1336
        %v1338 = vsel %vm463, %v1329, 0.0
        %1339 = vadd.xlane.f32.xlu0 %v1338
        %v1340 = vpop.xlane.xlu0 %1339
        %v1341 = vmul.f32 %v1334, %v467
        %v1342 = vmul.f32 %v1337, %v467
        %v1343 = vmul.f32 %v1340, %v467
        %v1344 = vsub.f32 %v1327, %v1341
        %v1345 = vsub.f32 %v1328, %v1342
        %v1346 = vsub.f32 %v1329, %v1343
        %v1347 = vmul.f32 %v1344, %v1344
        %v1348 = vmul.f32 %v1345, %v1345
        %v1349 = vmul.f32 %v1346, %v1346
        %v1350 = vsel %vm456, %v1347, 0.0
        %1351 = vadd.xlane.f32.xlu0 %v1350
        %v1352 = vpop.xlane.xlu0 %1351
        %v1353 = vsel %vm456, %v1348, 0.0
        %1354 = vadd.xlane.f32.xlu0 %v1353
        %v1355 = vpop.xlane.xlu0 %1354
        %v1356 = vsel %vm463, %v1349, 0.0
        %1357 = vadd.xlane.f32.xlu0 %v1356
        %v1358 = vpop.xlane.xlu0 %1357
        %v1359 = vmul.f32 %v1352, %v467
        %v1360 = vmul.f32 %v1355, %v467
        %v1361 = vmul.f32 %v1358, %v467
        %v1362 = vadd.f32 %v1359, 1e-05
        %v1363 = vadd.f32 %v1360, 1e-05
        %v1364 = vadd.f32 %v1361, 1e-05
        %v1365 = vrsqrt.pop %v1362
        %v1366 = vrsqrt.pop %v1363
        %v1367 = vrsqrt.pop %v1364
        %v1368 = vmul.f32 %v1344, %v1365
        %v1369 = vmul.f32 %v1345, %v1366
        %v1370 = vmul.f32 %v1346, %v1367
        %v1372 = vlaneseq
        %v1373 = vshrl.u32 %v1372, 7
        %v1374 = vsub.s32 0, %v1373
        %v1375 = vrot.slane %v1330, %v1374
        %v1377 = vmul.f32 %v1368, %v1375
        %v1378 = vmul.f32 %v1369, %v1375
        %v1379 = vmul.f32 %v1370, %v1375
        %v1381 = vlaneseq
        %v1382 = vshrl.u32 %v1381, 7
        %v1383 = vsub.s32 0, %v1382
        %v1384 = vrot.slane %v1331, %v1383
        %v1386 = vadd.f32 %v1377, %v1384
        %v1387 = vadd.f32 %v1378, %v1384
        %v1388 = vadd.f32 %v1379, %v1384
        %v1389 = vld [vmem:[%s8] sm:$0xff]
        %v1390 = vld [vmem:[%s8 + $0x8] sm:$0xff]
        %v1391 = vld [vmem:[%s8 + $0x10] sm:$0xff]
        %v1392 = vld [vmem:[%s8 + $0x18] sm:$0xff]
        %v1393 = vld [vmem:[%s9] sm:$0x1]
        %v1395 = vlaneseq
        %v1396 = vshrl.u32 %v1395, 7
        %v1397 = vsub.s32 0, %v1396
        %v1398 = vrot.slane %v1393, %v1397
        %v1401 = vsel %vm456, %v1386, 0
        %v1404 = vsel %vm456, %v1387, 0
        %v1407 = vsel %vm456, %v1388, 0
        %1409 = vmatprep.subr.mxu0 0.0
        %1410 = vmatpush1.msra.mxu0 %v1389
        %1411 = vmatprep.subr.mxu0 0.0
        %1412 = vmatpush1.msra.mxu0 %v1390
        %1413 = vmatprep.subr.mxu0 0.0
        %1414 = vmatpush1.msra.mxu0 %v1391
        %1415 = vmatprep.subr.mxu0 0.0
        %1416 = vmatpush1.msra.mxu0 %v1392
        %1417 = vmatprep.subr.mxu0 0.0
        %1418 = vmatpush1.msra.mxu0 0.0
        %1419 = vmatprep.subr.mxu0 0.0
        %1420 = vmatpush1.msra.mxu0 0.0
        %1421 = vmatprep.subr.mxu0 0.0
        %1422 = vmatpush1.msra.mxu0 0.0
        %1423 = vmatprep.subr.mxu0 0.0
        %1424 = vmatpush1.msra.mxu0 0.0
        %1425 = vmatprep.subr.mxu0 0.0
        %1426 = vmatpush1.msra.mxu0 0.0
        %1427 = vmatprep.subr.mxu0 0.0
        %1428 = vmatpush1.msra.mxu0 0.0
        %1429 = vmatprep.subr.mxu0 0.0
        %1430 = vmatpush1.msra.mxu0 0.0
        %1431 = vmatprep.subr.mxu0 0.0
        %1432 = vmatpush1.msra.mxu0 0.0
        %1433 = vmatprep.subr.mxu0 0.0
        %1434 = vmatpush1.msra.mxu0 0.0
        %1435 = vmatprep.subr.mxu0 0.0
        %1436 = vmatpush1.msra.mxu0 0.0
        %1437 = vmatprep.subr.mxu0 0.0
        %1438 = vmatpush1.msra.mxu0 0.0
        %1439 = vmatprep.subr.mxu0 0.0
        %1440 = vmatpush1.msra.mxu0 0.0
        %1441 = vmatprep.subr.mxu0 0.0
        %1442 = vmatpush1.msra.mxu0 0.0
        %1443 = vmatprep.subr.mxu0 0.0
        %1444 = vmatpush1.msra.mxu0 0.0
        %1445 = vmatprep.subr.mxu0 0.0
        %1446 = vmatpush1.msra.mxu0 0.0
        %1447 = vmatprep.subr.mxu0 0.0
        %1448 = vmatpush1.msra.mxu0 0.0
        %1449 = vmatprep.subr.mxu0 0.0
        %1450 = vmatpush1.msra.mxu0 0.0
        %1451 = vmatprep.subr.mxu0 0.0
        %1452 = vmatpush1.msra.mxu0 0.0
        %1453 = vmatprep.subr.mxu0 0.0
        %1454 = vmatpush1.msra.mxu0 0.0
        %1455 = vmatprep.subr.mxu0 0.0
        %1456 = vmatpush1.msra.mxu0 0.0
        %1457 = vmatprep.subr.mxu0 0.0
        %1458 = vmatpush1.msra.mxu0 0.0
        %1459 = vmatprep.subr.mxu0 0.0
        %1460 = vmatpush1.msra.mxu0 0.0
        %1461 = vmatprep.subr.mxu0 0.0
        %1462 = vmatpush1.msra.mxu0 0.0
        %1463 = vmatprep.subr.mxu0 0.0
        %1464 = vmatpush1.msra.mxu0 0.0
        %1465 = vmatprep.subr.mxu0 0.0
        %1466 = vmatpush1.msra.mxu0 0.0
        %1467 = vmatprep.subr.mxu0 0.0
        %1468 = vmatpush1.msra.mxu0 0.0
        %1469 = vmatprep.subr.mxu0 0.0
        %1470 = vmatpush1.msra.mxu0 0.0
        %1471 = vmatprep.subr.mxu0 0.0
        %1472 = vmatpush1.msra.mxu0 0.0
        %1473 = vmatprep.mubr.f32.mxu0 0.0
        %1474 = vmatmul.mubr.f32.gmra.mrb[0].mxu0 %v1401
        %v1475 = vpop.f32.mrb[0].mxu0
        %v1476 = vadd.f32 %v1398, %v1475
        %v1477 = vpop.f32.mrb[0].mxu0
        %1478 = vmatprep.mubr.f32.mxu0 0.0
        %1479 = vmatmul.mubr.f32.gmra.mrb[0].mxu0 %v1404
        %v1480 = vpop.f32.mrb[0].mxu0
        %v1481 = vadd.f32 %v1398, %v1480
        %v1482 = vpop.f32.mrb[0].mxu0
        %1483 = vmatprep.mubr.f32.mxu0 0.0
        %1484 = vmatmul.mubr.f32.gmra.mrb[0].mxu0 %v1407
        %v1485 = vpop.f32.mrb[0].mxu0
        %v1486 = vadd.f32 %v1398, %v1485
        %v1487 = vpop.f32.mrb[0].mxu0
        %1488 = vdwg.mxu0
        %v1489 = vmul.f32 %v1476, 0.5
        %v1490 = vmul.f32 %v1481, 0.5
        %v1491 = vmul.f32 %v1486, 0.5
        %v1492 = vmul.f32 %v1476, 0.70710677
        %v1493 = vmul.f32 %v1481, 0.70710677
        %v1494 = vmul.f32 %v1486, 0.70710677
        %vm1495 = vcmp.ge.f32.partialorder %v1492, 0.0
        %vm1496 = vcmp.ge.f32.partialorder %v1493, 0.0
        %vm1497 = vcmp.ge.f32.partialorder %v1494, 0.0
        %v1498 = vsel %vm1495, 1.0, -1.0
        %v1499 = vsel %vm1496, 1.0, -1.0
        %v1500 = vsel %vm1497, 1.0, -1.0
        %v1501 = vand.u32 2147483647, %v1492
        %v1502 = vand.u32 2147483647, %v1493
        %v1503 = vand.u32 2147483647, %v1494
        %v1504 = vmul.f32 %v1501, 0.3275911
        %v1505 = vmul.f32 %v1502, 0.3275911
        %v1506 = vmul.f32 %v1503, 0.3275911
        %v1507 = vadd.f32 %v1504, 1.0
        %v1508 = vadd.f32 %v1505, 1.0
        %v1509 = vadd.f32 %v1506, 1.0
        %v1510 = vrcp.pop %v1507
        %v1511 = vmul.f32 1.0, %v1510
        %v1512 = vrcp.pop %v1508
        %v1513 = vmul.f32 1.0, %v1512
        %v1514 = vrcp.pop %v1509
        %v1515 = vmul.f32 1.0, %v1514
        %v1516 = vmul.f32 %v1511, 1.0614054
        %v1517 = vmul.f32 %v1513, 1.0614054
        %v1518 = vmul.f32 %v1515, 1.0614054
        %v1519 = vadd.f32 %v1516, -1.4531521
        %v1520 = vadd.f32 %v1517, -1.4531521
        %v1521 = vadd.f32 %v1518, -1.4531521
        %v1522 = vmul.f32 %v1519, %v1511
        %v1523 = vmul.f32 %v1520, %v1513
        %v1524 = vmul.f32 %v1521, %v1515
        %v1525 = vadd.f32 %v1522, 1.4214138
        %v1526 = vadd.f32 %v1523, 1.4214138
        %v1527 = vadd.f32 %v1524, 1.4214138
        %v1528 = vmul.f32 %v1525, %v1511
        %v1529 = vmul.f32 %v1526, %v1513
        %v1530 = vmul.f32 %v1527, %v1515
        %v1531 = vadd.f32 %v1528, -0.28449672
        %v1532 = vadd.f32 %v1529, -0.28449672
        %v1533 = vadd.f32 %v1530, -0.28449672
        %v1534 = vmul.f32 %v1531, %v1511
        %v1535 = vmul.f32 %v1532, %v1513
        %v1536 = vmul.f32 %v1533, %v1515
        %v1537 = vadd.f32 %v1534, 0.2548296
        %v1538 = vadd.f32 %v1535, 0.2548296
        %v1539 = vadd.f32 %v1536, 0.2548296
        %v1540 = vmul.f32 %v1537, %v1511
        %v1541 = vmul.f32 %v1538, %v1513
        %v1542 = vmul.f32 %v1539, %v1515
        %v1543 = vsub.f32 0.0, %v1501
        %v1544 = vsub.f32 0.0, %v1502
        %v1545 = vsub.f32 0.0, %v1503
        %v1546 = vmul.f32 %v1543, %v1501
        %v1547 = vmul.f32 %v1544, %v1502
        %v1548 = vmul.f32 %v1545, %v1503
        %v1549 = vmul.f32 %v1546, 1.442695
        %v1550 = vpow.pop %v1549
        %v1551 = vmul.f32 %v1547, 1.442695
        %v1552 = vpow.pop %v1551
        %v1553 = vmul.f32 %v1548, 1.442695
        %v1554 = vpow.pop %v1553
        %v1555 = vmul.f32 %v1540, %v1550
        %v1556 = vmul.f32 %v1541, %v1552
        %v1557 = vmul.f32 %v1542, %v1554
        %v1558 = vsub.f32 1.0, %v1555
        %v1559 = vsub.f32 1.0, %v1556
        %v1560 = vsub.f32 1.0, %v1557
        %v1561 = vmul.f32 %v1498, %v1558
        %v1562 = vmul.f32 %v1499, %v1559
        %v1563 = vmul.f32 %v1500, %v1560
        %v1564 = vadd.f32 %v1561, 1.0
        %v1565 = vadd.f32 %v1562, 1.0
        %v1566 = vadd.f32 %v1563, 1.0
        %v1567 = vmul.f32 %v1489, %v1564
        %v1568 = vmul.f32 %v1490, %v1565
        %v1569 = vmul.f32 %v1491, %v1566
        %v1570 = vld [vmem:[%s10] sm:$0xff]
        %v1571 = vld [vmem:[%s10 + $0x8] sm:$0xff]
        %v1572 = vld [vmem:[%s10 + $0x10] sm:$0xff]
        %v1573 = vld [vmem:[%s10 + $0x18] sm:$0xff]
        %v1574 = vld [vmem:[%s10 + $0x20] sm:$0xff]
        %v1575 = vld [vmem:[%s10 + $0x28] sm:$0xff]
        %v1576 = vld [vmem:[%s10 + $0x30] sm:$0xff]
        %v1577 = vld [vmem:[%s10 + $0x38] sm:$0xff]
        %v1578 = vld [vmem:[%s10 + $0x40] sm:$0xff]
        %v1579 = vld [vmem:[%s10 + $0x48] sm:$0xff]
        %v1580 = vld [vmem:[%s10 + $0x50] sm:$0xff]
        %v1581 = vld [vmem:[%s10 + $0x58] sm:$0xff]
        %v1582 = vld [vmem:[%s10 + $0x60] sm:$0xff]
        %v1583 = vld [vmem:[%s10 + $0x68] sm:$0xff]
        %v1584 = vld [vmem:[%s10 + $0x70] sm:$0xff]
        %v1585 = vld [vmem:[%s10 + $0x78] sm:$0xff]
        %v1586 = vld [vmem:[%s11] sm:$0x1]
        %v1588 = vlaneseq
        %v1589 = vshrl.u32 %v1588, 7
        %v1590 = vsub.s32 0, %v1589
        %v1591 = vrot.slane %v1586, %v1590
        %1593 = vmatprep.subr.mxu0 0.0
        %1594 = vmatpush1.msra.mxu0 %v1570
        %1595 = vmatprep.subr.mxu0 0.0
        %1596 = vmatpush1.msra.mxu0 %v1571
        %1597 = vmatprep.subr.mxu0 0.0
        %1598 = vmatpush1.msra.mxu0 %v1572
        %1599 = vmatprep.subr.mxu0 0.0
        %1600 = vmatpush1.msra.mxu0 %v1573
        %1601 = vmatprep.subr.mxu0 0.0
        %1602 = vmatpush1.msra.mxu0 %v1574
        %1603 = vmatprep.subr.mxu0 0.0
        %1604 = vmatpush1.msra.mxu0 %v1575
        %1605 = vmatprep.subr.mxu0 0.0
        %1606 = vmatpush1.msra.mxu0 %v1576
        %1607 = vmatprep.subr.mxu0 0.0
        %1608 = vmatpush1.msra.mxu0 %v1577
        %1609 = vmatprep.subr.mxu0 0.0
        %1610 = vmatpush1.msra.mxu0 %v1578
        %1611 = vmatprep.subr.mxu0 0.0
        %1612 = vmatpush1.msra.mxu0 %v1579
        %1613 = vmatprep.subr.mxu0 0.0
        %1614 = vmatpush1.msra.mxu0 %v1580
        %1615 = vmatprep.subr.mxu0 0.0
        %1616 = vmatpush1.msra.mxu0 %v1581
        %1617 = vmatprep.subr.mxu0 0.0
        %1618 = vmatpush1.msra.mxu0 %v1582
        %1619 = vmatprep.subr.mxu0 0.0
        %1620 = vmatpush1.msra.mxu0 %v1583
        %1621 = vmatprep.subr.mxu0 0.0
        %1622 = vmatpush1.msra.mxu0 %v1584
        %1623 = vmatprep.subr.mxu0 0.0
        %1624 = vmatpush1.msra.mxu0 %v1585
        %1625 = vmatprep.subr.mxu0 0.0
        %1626 = vmatpush1.msra.mxu0 0.0
        %1627 = vmatprep.subr.mxu0 0.0
        %1628 = vmatpush1.msra.mxu0 0.0
        %1629 = vmatprep.subr.mxu0 0.0
        %1630 = vmatpush1.msra.mxu0 0.0
        %1631 = vmatprep.subr.mxu0 0.0
        %1632 = vmatpush1.msra.mxu0 0.0
        %1633 = vmatprep.subr.mxu0 0.0
        %1634 = vmatpush1.msra.mxu0 0.0
        %1635 = vmatprep.subr.mxu0 0.0
        %1636 = vmatpush1.msra.mxu0 0.0
        %1637 = vmatprep.subr.mxu0 0.0
        %1638 = vmatpush1.msra.mxu0 0.0
        %1639 = vmatprep.subr.mxu0 0.0
        %1640 = vmatpush1.msra.mxu0 0.0
        %1641 = vmatprep.subr.mxu0 0.0
        %1642 = vmatpush1.msra.mxu0 0.0
        %1643 = vmatprep.subr.mxu0 0.0
        %1644 = vmatpush1.msra.mxu0 0.0
        %1645 = vmatprep.subr.mxu0 0.0
        %1646 = vmatpush1.msra.mxu0 0.0
        %1647 = vmatprep.subr.mxu0 0.0
        %1648 = vmatpush1.msra.mxu0 0.0
        %1649 = vmatprep.subr.mxu0 0.0
        %1650 = vmatpush1.msra.mxu0 0.0
        %1651 = vmatprep.subr.mxu0 0.0
        %1652 = vmatpush1.msra.mxu0 0.0
        %1653 = vmatprep.subr.mxu0 0.0
        %1654 = vmatpush1.msra.mxu0 0.0
        %1655 = vmatprep.subr.mxu0 0.0
        %1656 = vmatpush1.msra.mxu0 0.0
        %1657 = vmatprep.mubr.f32.mxu0 0.0
        %1658 = vmatmul.mubr.f32.gmra.mrb[0].mxu0 %v1567
        %v1659 = vpop.f32.mrb[0].mxu0
        %v1660 = vadd.f32 %v1591, %v1659
        %v1661 = vpop.f32.mrb[0].mxu0
        %1662 = vmatprep.mubr.f32.mxu0 0.0
        %1663 = vmatmul.mubr.f32.gmra.mrb[0].mxu0 %v1568
        %v1664 = vpop.f32.mrb[0].mxu0
        %v1665 = vadd.f32 %v1591, %v1664
        %v1666 = vpop.f32.mrb[0].mxu0
        %1667 = vmatprep.mubr.f32.mxu0 0.0
        %1668 = vmatmul.mubr.f32.gmra.mrb[0].mxu0 %v1569
        %v1669 = vpop.f32.mrb[0].mxu0
        %v1670 = vadd.f32 %v1591, %v1669
        %v1671 = vpop.f32.mrb[0].mxu0
        %1672 = vdwg.mxu0
        %v1673 = vadd.f32 %v1327, %v1660
        %v1674 = vadd.f32 %v1328, %v1665
        %v1675 = vadd.f32 %v1329, %v1670
        %1676 = vst.msk [vmem:[%s450] sm:$0xff] %vm456, %v1673
        %1677 = vst.msk [vmem:[%s450 + $0x8] sm:$0xff] %vm456, %v1674
        %1678 = vst.msk [vmem:[%s450 + $0x10] sm:$0x1] %vm463, %v1675
        %p1679 = scmp.lt.s32.totalorder %s28, 1
        %s1680 = scalar_select %p1679, %s28, 1
        %s1681 = smul.addr %s1680, 3
        %s1682 = smul.addr %s1681, 8
        %s1683 = scalar_lea.vmem %s12, %s1682
        %s1684 = sand.u32 %s319, 1
        %s1685 = scalar_lea.sflag [#allocation6], %s1684
        %s1686 = sand.u32 %s319, 1
        %s1687 = scalar_lea.vmem [#allocation5], %s1686
        // Predicated region
        $region69: #{tpu_custom_call.1} parent=67 // pred_check
          %p1688 = pneg %p303
        $region70: #{tpu_custom_call.1} parent=67 // pred_check_branch
          %1690 = sbr.rel (%p1688) target = $region72
        $region71: #{tpu_custom_call.1} parent=67 // pred_region
          _
        $region72: #{tpu_custom_call.1} parent=67 // pred_fallthru
          _
        // Predicated region
        $region73: #{tpu_custom_call.1} parent=67 // pred_check
          %p1691 = pneg %p329
        $region74: #{tpu_custom_call.1} parent=67 // pred_check_branch
          %1693 = sbr.rel (%p1691) target = $region76
        $region75: #{tpu_custom_call.1} parent=67 // pred_region
          %s1695 = ssub.s32 16, 16
          %1696 = vsyncadd %s1685, %s1695
          %s1697 = smul.addr %s28, 16
          %s1698 = scalar_lea.hbm %s13, %s1697
          %s1700 = sshll.u32 %s1687, 4
          %s1701 = int_to_ptr.vmem [resolvable:$true] %s1700
          %1703 = dma.vmem_to_hbm [thread:$0]  %s1701, 16, %s1698, %s1685
        $region76: #{tpu_custom_call.1} parent=67 // pred_fallthru
          _
      $region68: #{tpu_custom_call.1} parent=5 // pred_fallthru
        _
      %p1704 = scmp.le.s32.totalorder 2, %s23
      // Predicated region
      $region77: #{tpu_custom_call.1} parent=5 // pred_check
        %p1705 = pneg %p1704
      $region78: #{tpu_custom_call.1} parent=5 // pred_check_branch
        %1707 = sbr.rel (%p1705) target = $region80
      $region79: #{tpu_custom_call.1} parent=5 // pred_region
        %s1708 = ssub.s32 %s23, 2
        // Predicated region
        $region81: #{tpu_custom_call.1} parent=79 // pred_check
          %p1709 = pneg %p309
        $region82: #{tpu_custom_call.1} parent=79 // pred_check_branch
          %1711 = sbr.rel (%p1709) target = $region84
        $region83: #{tpu_custom_call.1} parent=79 // pred_region
          %p1712 = scmp.lt.s32.totalorder %s29, 1
          %s1713 = scalar_select %p1712, %s29, 1
          %s1714 = smul.addr %s1713, 3
          %s1715 = smul.addr %s1714, 8
          %s1716 = scalar_lea.vmem %s12, %s1715
        $region84: #{tpu_custom_call.1} parent=79 // pred_fallthru
          _
        // Predicated region
        $region85: #{tpu_custom_call.1} parent=79 // pred_check
          %p1717 = pneg %p335
        $region86: #{tpu_custom_call.1} parent=79 // pred_check_branch
          %1719 = sbr.rel (%p1717) target = $region88
        $region87: #{tpu_custom_call.1} parent=79 // pred_region
          %s1720 = sand.u32 %s320, 1
          %s1721 = scalar_lea.sflag [#allocation6], %s1720
          %s1722 = sand.u32 %s320, 1
          %s1723 = scalar_lea.vmem [#allocation5], %s1722
          %1724 = dma.done %s1721, 16
        $region88: #{tpu_custom_call.1} parent=79 // pred_fallthru
          _
      $region80: #{tpu_custom_call.1} parent=5 // pred_fallthru
        _
    $region6: #{tpu_custom_call.1} parent=1 // loop_footer
      %s27 = sadd.s32 1, %s23
    $region7: #{tpu_custom_call.1} parent=1 // loop_footer_branch
      %22 = sbr.rel target = $region3
    $region8: #{tpu_custom_call.1} parent=1 // loop_exit
      _
    %1725 = vsyncpa [#allocation6], 1
    %s1726 = scalar_lea.sflag [#allocation6], 1
    %1727 = vsyncpa %s1726, 1

</llo_original>
